<compile_context>
chip_gen: v7x
topology: tpu7x:2x2x1
jax: 0.10.0
libtpu: 0.0.40
codegen_flags: <defaults>
</compile_context>

<pallas_src>
import jax
import jax.numpy as jnp
from jax import lax
from jax.experimental import pallas as pl
from jax.experimental.pallas import tpu as pltpu


def temporal_attention_kernel(x_ref, s_ref, slab_ref, out_ref, h_all_ref, us_ref):
    # x_ref : (T*B, D) time-major flattened input for this sequence
    # s_ref : (B, D)
    # slab  : (4*D + 32, D) packed weights (layout documented in prepare_params)
    # out   : (B, D)
    # h_all : VMEM scratch (T*B, 2H) time-ordered [h_fwd | h_bwd] hidden states
    # us    : VMEM scratch (T*B, D)  replicated s-projection (+ Linear1 bias)
    TB, D = x_ref.shape
    B = s_ref.shape[0]
    T = TB // B
    H = D // 2
    R = 4 * D  # start of the 1-row vector region of the slab

    # Static-offset views into the single packed operand.
    wih = slab_ref[0:D, :]                 # (D, 2H)  [W_ih_f.T | W_ih_b.T]
    whh_c = slab_ref[D:2 * D, :]           # (2H, 2H) blockdiag(W_hh_f.T, W_hh_b.T)
    w1s = slab_ref[2 * D:3 * D, :]         # (D, D)   Linear1 slice acting on s (transposed)
    w1h = slab_ref[3 * D:4 * D, :]         # (2H, D)  Linear1 slice acting on [h_f | h_b]
    bc = slab_ref[R:R + 1, :]              # (1, 2H)  [b_ih_f+b_hh_f | b_ih_b+b_hh_b]
    b1 = slab_ref[R + 8:R + 9, :]          # (1, D)
    w2 = slab_ref[R + 16:R + 17, :]        # (1, D)   Linear2 weight row
    b2 = slab_ref[R + 24:R + 25, :][:, :1]  # (1, 1)  Linear2 bias (row filled with b2)

    # s-projection: independent of the recurrence, so it is computed once and its
    # T replicas are stored into VMEM scratch; these stores hide under the chain.
    u_s = jnp.dot(s_ref[...], w1s, preferred_element_type=jnp.float32) + b1   # (B, D)
    for t in range(T):
        us_ref[t * B:(t + 1) * B, :] = u_s

    # Hoisted input projection: ONE MXU matmul covers both directions, all t.
    xp = jnp.dot(x_ref[...], wih, preferred_element_type=jnp.float32) + bc    # (T*B, 2H)

    # Pre-assemble per-step fused inputs (no dependence on the carried state ->
    # off the serial critical path).  16+16-lane concat stays in one lane group.
    xc = [jnp.concatenate([xp[k * B:(k + 1) * B, :H],
                           xp[(T - 1 - k) * B:(T - k) * B, H:]], axis=1)
          for k in range(T)]

    # Fused bidirectional tanh recurrence: one serial chain of T steps (unrolled),
    # carrying hc_k = [h_fwd(time k) | h_bwd(time T-1-k)] of shape (B, 2H).
    hc = jnp.zeros((B, 2 * H), jnp.float32)
    for k in range(T):
        hc = jnp.tanh(xc[k] + jnp.dot(hc, whh_c, preferred_element_type=jnp.float32))
        # Scatter into the time-ordered hidden-state scratch; the two tiny masked
        # stores per step hide under the MXU + tanh latency of the chain.
        h_all_ref[k * B:(k + 1) * B, 0:H] = hc[:, :H]
        h_all_ref[(T - 1 - k) * B:(T - k) * B, H:2 * H] = hc[:, H:]

    # Score MLP: one merged (T*B,2H)x(2H,D) hidden projection + pre-staged s term.
    h_all = h_all_ref[...]                                            # (T*B, 2H)
    u = jnp.tanh(jnp.dot(h_all, w1h, preferred_element_type=jnp.float32)
                 + us_ref[...])                                       # (T*B, D)

    # Attention scores via a VPU lane reduce (avoids an N=1 MXU matmul).
    e = jnp.tanh(jnp.sum(u * w2, axis=-1, keepdims=True) + b2)        # (T*B, 1)

    # Softmax over time per batch row: straight-line tree over T tiny (B, 1) tiles.
    e_t = [e[t * B:(t + 1) * B, :] for t in range(T)]
    m = e_t[0]
    for t in range(1, T):
        m = jnp.maximum(m, e_t[t])
    p_t = [jnp.exp(v - m) for v in e_t]
    denom = p_t[0]
    for t in range(1, T):
        denom = denom + p_t[t]
    inv = 1.0 / denom   # exact divide: approx reciprocal was the largest numeric deviation

    # Weighted-sum pooling over time -> a single full-tile (B, D) store.
    acc = (p_t[0] * inv) * h_all[0:B, :]
    for t in range(1, T):
        acc = acc + (p_t[t] * inv) * h_all[t * B:(t + 1) * B, :]
    out_ref[...] = acc


def prepare_params(params):
    """One-time packing of all weights/biases into a single 8-row-aligned f32 slab.

    Hoisted out of the per-call jit (the per-call transposes/concats cost as much
    as the kernel at these shapes).  Row layout (all blocks D columns wide):
      [0,   D) : wih   = [W_ih_f.T | W_ih_b.T]
      [D,  2D) : whh_c = blockdiag(W_hh_f.T, W_hh_b.T)
      [2D, 3D) : w1s   = W1[:, :D].T
      [3D, 4D) : w1h   = W1[:, D:].T
      4D       : bc    = [b_ih_f + b_hh_f | b_ih_b + b_hh_b]
      4D + 8   : b1
      4D + 16  : w2
      4D + 24  : b2 (broadcast across the row)
    """
    H, D = params['wih_f'].shape
    assert D == 2 * H and D % 8 == 0
    f32 = jnp.float32

    wih = jnp.concatenate([params['wih_f'].T, params['wih_b'].T], axis=1)      # (D, 2H)
    zH = jnp.zeros((H, H), f32)
    whh_c = jnp.block([[params['whh_f'].T, zH], [zH, params['whh_b'].T]])      # (2H, 2H)
    w1 = params['w1']
    w1s = w1[:, :D].T                                                          # (D, D)
    w1h = w1[:, D:].T                                                          # (2H, D)
    bc = jnp.concatenate([params['bih_f'] + params['bhh_f'],
                          params['bih_b'] + params['bhh_b']]).reshape(1, D)
    b1 = params['b1'].reshape(1, D)
    w2 = params['w2'].reshape(1, D)
    b2 = jnp.full((1, D), params['b2'][0], f32)

    def pad8(a):
        r = (-a.shape[0]) % 8
        if r == 0:
            return a
        return jnp.concatenate([a, jnp.zeros((r, a.shape[1]), a.dtype)], axis=0)

    slab = jnp.concatenate(
        [wih, whh_c, w1s, w1h, pad8(bc), pad8(b1), pad8(w2), pad8(b2)],
        axis=0).astype(f32)
    return slab


def temporal_attention_batched(s, x, slab):
    """s: (N, B, D), x: (N, T, B, D) time-major, slab from prepare_params().
    Returns (N, B, D).  grid=(N,) with parallel semantics so independent
    sequences amortize launch/DMA overhead and shard across v7x's 2 TensorCores."""
    N, T, B, D = x.shape
    x_flat = x.reshape(N, T * B, D)
    SR = slab.shape[0]

    flops = N * (2 * T * B * D * D      # hoisted input projection (2H == D)
                 + 2 * T * B * D * D    # fused recurrence
                 + 2 * B * D * D        # s projection
                 + 2 * T * B * D * D    # merged hidden projection
                 + 4 * T * B * D)       # score reduce + pooling
    transcendentals = N * (2 * T * B * D + 2 * T * B)
    bytes_accessed = 4 * (N * (T * B * D + 2 * B * D) + int(slab.size))

    return pl.pallas_call(
        temporal_attention_kernel,
        out_shape=jax.ShapeDtypeStruct((N, B, D), jnp.float32),
        grid=(N,),
        in_specs=[
            pl.BlockSpec((None, T * B, D), lambda n: (n, 0, 0)),   # x, per sequence
            pl.BlockSpec((None, B, D), lambda n: (n, 0, 0)),       # s, per sequence
            pl.BlockSpec((SR, D), lambda n: (0, 0)),               # packed weights, shared
        ],
        out_specs=pl.BlockSpec((None, B, D), lambda n: (n, 0, 0)),
        scratch_shapes=[
            pltpu.VMEM((T * B, D), jnp.float32),   # time-ordered [h_fwd | h_bwd]
            pltpu.VMEM((T * B, D), jnp.float32),   # replicated s-projection
        ],
        compiler_params=pltpu.CompilerParams(dimension_semantics=("parallel",)),
        cost_estimate=pl.CostEstimate(flops=flops,
                                      transcendentals=transcendentals,
                                      bytes_accessed=bytes_accessed),
    )(x_flat, s, slab)


def temporal_attention(s, x, slab):
    """Module-faithful API: s (B, D), x (T, B, D) -> (B, D)."""
    return temporal_attention_batched(s[None], x[None], slab)[0]


def temporal_attention_reference(s, x, params):
    """Pure-JAX reference mirroring the PyTorch forward exactly."""
    T, B, D = x.shape
    H = D // 2

    def run_dir(wih, whh, bih, bhh, xs):
        def step(hprev, xt):
            hn = jnp.tanh(xt @ wih.T + bih + hprev @ whh.T + bhh)
            return hn, hn
        _, hs = lax.scan(step, jnp.zeros((B, H), jnp.float32), xs)
        return hs

    hf = run_dir(params['wih_f'], params['whh_f'], params['bih_f'], params['bhh_f'], x)
    hb = run_dir(params['wih_b'], params['whh_b'], params['bih_b'], params['bhh_b'], x[::-1])[::-1]
    h = jnp.concatenate([hf, hb], axis=-1)                                   # (T, B, D)

    cat = jnp.concatenate([jnp.broadcast_to(s, (T, B, D)), h], axis=-1)      # (T, B, 2D)
    u = jnp.tanh(cat @ params['w1'].T + params['b1'])
    e = jnp.tanh(u @ params['w2'].T + params['b2'])                          # (T, B, 1)
    a = jax.nn.softmax(e[..., 0], axis=0)                                    # softmax over time
    return (a[..., None] * h).sum(0)                                         # (B, D)


def make_params(key, ninput):
    D = ninput
    H = D // 2
    keys = jax.random.split(key, 12)
    sc = 0.1
    return {
        'wih_f': sc * jax.random.normal(keys[0], (H, D), jnp.float32),
        'whh_f': sc * jax.random.normal(keys[1], (H, H), jnp.float32),
        'bih_f': sc * jax.random.normal(keys[2], (H,), jnp.float32),
        'bhh_f': sc * jax.random.normal(keys[3], (H,), jnp.float32),
        'wih_b': sc * jax.random.normal(keys[4], (H, D), jnp.float32),
        'whh_b': sc * jax.random.normal(keys[5], (H, H), jnp.float32),
        'bih_b': sc * jax.random.normal(keys[6], (H,), jnp.float32),
        'bhh_b': sc * jax.random.normal(keys[7], (H,), jnp.float32),
        'w1': sc * jax.random.normal(keys[8], (D, 2 * D), jnp.float32),
        'b1': sc * jax.random.normal(keys[9], (D,), jnp.float32),
        'w2': sc * jax.random.normal(keys[10], (1, D), jnp.float32),
        'b2': sc * jax.random.normal(keys[11], (1,), jnp.float32),
    }


if __name__ == "__main__":
    T, B, D = 8, 2, 32  # seq len, batch, ninput (hidden per direction = 16)
    key = jax.random.PRNGKey(0)
    kx, ks, kp = jax.random.split(key, 3)
    x = jax.random.normal(kx, (T, B, D), jnp.float32)
    s = jax.random.normal(ks, (B, D), jnp.float32)
    params = make_params(kp, D)

    # One-time weight packing (hoisted out of the per-call path).
    slab = jax.device_put(prepare_params(params))

    # Single-sequence (module-faithful) path.
    ta = jax.jit(temporal_attention)
    out = jax.block_until_ready(ta(s, x, slab))
    ref = temporal_attention_reference(s, x, params)
    assert out.shape == (B, D)
    assert bool(jnp.all(jnp.isfinite(out)))
    assert jnp.allclose(out, ref, rtol=2e-3, atol=2e-3), (
        f"max abs diff {jnp.max(jnp.abs(out - ref))}")

    # Batched path: grid over independent sequences (throughput lever on all gens).
    N = 4
    kxs, kss = jax.random.split(jax.random.PRNGKey(1))
    xs = jax.random.normal(kxs, (N, T, B, D), jnp.float32)
    ss = jax.random.normal(kss, (N, B, D), jnp.float32)
    tab = jax.jit(temporal_attention_batched)
    outs = jax.block_until_ready(tab(ss, xs, slab))
    refs = jnp.stack([temporal_attention_reference(ss[i], xs[i], params)
                      for i in range(N)])
    assert jnp.allclose(outs, refs, rtol=2e-3, atol=2e-3), (
        f"max abs diff {jnp.max(jnp.abs(outs - refs))}")

    print("KERNEL_OK")
</pallas_src>

<mosaic_0001>
module attributes {stable_mosaic.version = 11 : i64} {
  func.func @temporal_attention_kernel(%arg0: i32, %arg1: memref<1x16x32xf32, #tpu.memory_space<vmem>>, %arg2: memref<1x2x32xf32, #tpu.memory_space<vmem>>, %arg3: memref<160x32xf32, #tpu.memory_space<vmem>>, %arg4: memref<1x2x32xf32, #tpu.memory_space<vmem>>, %arg5: memref<16x32xf32, #tpu.memory_space<vmem>>, %arg6: memref<16x32xf32, #tpu.memory_space<vmem>>) attributes {dimension_semantics = [#tpu.dimension_semantics<parallel>], iteration_bounds = array<i64: 1>, scalar_prefetch = 0 : i64, scratch_operands = 2 : i64, tpu.core_type = #tpu.core_type<tc>, window_params = [{transform_indices = @transform_0, window_bounds = array<i64: 1, 16, 32>}, {transform_indices = @transform_1, window_bounds = array<i64: 1, 2, 32>}, {pipeline_mode = #tpu.pipeline_mode<synchronous>, transform_indices = @transform_2, window_bounds = array<i64: 160, 32>}, {transform_indices = @transform_3, window_bounds = array<i64: 1, 2, 32>}]} {
    %c0 = arith.constant 0 : index
    %c0_0 = arith.constant 0 : index
    %0 = vector.load %arg3[%c0, %c0_0] : memref<160x32xf32, #tpu.memory_space<vmem>>, vector<32x32xf32>
    %c32 = arith.constant 32 : index
    %c0_1 = arith.constant 0 : index
    %1 = vector.load %arg3[%c32, %c0_1] : memref<160x32xf32, #tpu.memory_space<vmem>>, vector<32x32xf32>
    %c64 = arith.constant 64 : index
    %c0_2 = arith.constant 0 : index
    %2 = vector.load %arg3[%c64, %c0_2] : memref<160x32xf32, #tpu.memory_space<vmem>>, vector<32x32xf32>
    %c96 = arith.constant 96 : index
    %c0_3 = arith.constant 0 : index
    %3 = vector.load %arg3[%c96, %c0_3] : memref<160x32xf32, #tpu.memory_space<vmem>>, vector<32x32xf32>
    %c128 = arith.constant 128 : index
    %c0_4 = arith.constant 0 : index
    %4 = vector.load %arg3[%c128, %c0_4] : memref<160x32xf32, #tpu.memory_space<vmem>>, vector<1x32xf32>
    %c136 = arith.constant 136 : index
    %c0_5 = arith.constant 0 : index
    %5 = vector.load %arg3[%c136, %c0_5] : memref<160x32xf32, #tpu.memory_space<vmem>>, vector<1x32xf32>
    %c144 = arith.constant 144 : index
    %c0_6 = arith.constant 0 : index
    %6 = vector.load %arg3[%c144, %c0_6] : memref<160x32xf32, #tpu.memory_space<vmem>>, vector<1x32xf32>
    %c152 = arith.constant 152 : index
    %c0_7 = arith.constant 0 : index
    %7 = vector.load %arg3[%c152, %c0_7] : memref<160x32xf32, #tpu.memory_space<vmem>>, vector<1x32xf32>
    %8 = vector.extract_strided_slice %7 {offsets = [0, 0], sizes = [1, 1], strides = [1, 1]} : vector<1x32xf32> to vector<1x1xf32>
    %c0_8 = arith.constant 0 : index
    %c0_9 = arith.constant 0 : index
    %c0_10 = arith.constant 0 : index
    %9 = vector.load %arg2[%c0_8, %c0_9, %c0_10] : memref<1x2x32xf32, #tpu.memory_space<vmem>>, vector<1x2x32xf32>
    %10 = vector.shape_cast %9 : vector<1x2x32xf32> to vector<2x32xf32>
    %cst = arith.constant dense<0.000000e+00> : vector<2x32xf32>
    %11 = tpu.matmul %10, %2, %cst {dimension_numbers = #tpu.dot_dimension_numbers<[1], [0], [0], [1], [0, 0, 1, 1], [], []>} : vector<2x32xf32>, vector<32x32xf32>, vector<2x32xf32> -> vector<2x32xf32>
    %12 = vector.broadcast %5 : vector<1x32xf32> to vector<2x32xf32>
    %13 = arith.addf %11, %12 : vector<2x32xf32>
    %c0_11 = arith.constant 0 : index
    %c0_12 = arith.constant 0 : index
    %14 = vector.load %arg6[%c0_11, %c0_12] : memref<16x32xf32, #tpu.memory_space<vmem>>, vector<2x32xf32>
    tpu.vector_store %arg6[%c0_11, %c0_12], %13 {strides = array<i32>} : memref<16x32xf32, #tpu.memory_space<vmem>>, vector<2x32xf32>,
    %c2 = arith.constant 2 : index
    %c0_13 = arith.constant 0 : index
    %15 = vector.load %arg6[%c2, %c0_13] : memref<16x32xf32, #tpu.memory_space<vmem>>, vector<2x32xf32>
    tpu.vector_store %arg6[%c2, %c0_13], %13 {strides = array<i32>} : memref<16x32xf32, #tpu.memory_space<vmem>>, vector<2x32xf32>,
    %c4 = arith.constant 4 : index
    %c0_14 = arith.constant 0 : index
    %16 = vector.load %arg6[%c4, %c0_14] : memref<16x32xf32, #tpu.memory_space<vmem>>, vector<2x32xf32>
    tpu.vector_store %arg6[%c4, %c0_14], %13 {strides = array<i32>} : memref<16x32xf32, #tpu.memory_space<vmem>>, vector<2x32xf32>,
    %c6 = arith.constant 6 : index
    %c0_15 = arith.constant 0 : index
    %17 = vector.load %arg6[%c6, %c0_15] : memref<16x32xf32, #tpu.memory_space<vmem>>, vector<2x32xf32>
    tpu.vector_store %arg6[%c6, %c0_15], %13 {strides = array<i32>} : memref<16x32xf32, #tpu.memory_space<vmem>>, vector<2x32xf32>,
    %c8 = arith.constant 8 : index
    %c0_16 = arith.constant 0 : index
    %18 = vector.load %arg6[%c8, %c0_16] : memref<16x32xf32, #tpu.memory_space<vmem>>, vector<2x32xf32>
    tpu.vector_store %arg6[%c8, %c0_16], %13 {strides = array<i32>} : memref<16x32xf32, #tpu.memory_space<vmem>>, vector<2x32xf32>,
    %c10 = arith.constant 10 : index
    %c0_17 = arith.constant 0 : index
    %19 = vector.load %arg6[%c10, %c0_17] : memref<16x32xf32, #tpu.memory_space<vmem>>, vector<2x32xf32>
    tpu.vector_store %arg6[%c10, %c0_17], %13 {strides = array<i32>} : memref<16x32xf32, #tpu.memory_space<vmem>>, vector<2x32xf32>,
    %c12 = arith.constant 12 : index
    %c0_18 = arith.constant 0 : index
    %20 = vector.load %arg6[%c12, %c0_18] : memref<16x32xf32, #tpu.memory_space<vmem>>, vector<2x32xf32>
    tpu.vector_store %arg6[%c12, %c0_18], %13 {strides = array<i32>} : memref<16x32xf32, #tpu.memory_space<vmem>>, vector<2x32xf32>,
    %c14 = arith.constant 14 : index
    %c0_19 = arith.constant 0 : index
    %21 = vector.load %arg6[%c14, %c0_19] : memref<16x32xf32, #tpu.memory_space<vmem>>, vector<2x32xf32>
    tpu.vector_store %arg6[%c14, %c0_19], %13 {strides = array<i32>} : memref<16x32xf32, #tpu.memory_space<vmem>>, vector<2x32xf32>,
    %c0_20 = arith.constant 0 : index
    %c0_21 = arith.constant 0 : index
    %c0_22 = arith.constant 0 : index
    %22 = vector.load %arg1[%c0_20, %c0_21, %c0_22] : memref<1x16x32xf32, #tpu.memory_space<vmem>>, vector<1x16x32xf32>
    %23 = vector.shape_cast %22 : vector<1x16x32xf32> to vector<16x32xf32>
    %cst_23 = arith.constant dense<0.000000e+00> : vector<16x32xf32>
    %24 = tpu.matmul %23, %0, %cst_23 {dimension_numbers = #tpu.dot_dimension_numbers<[1], [0], [0], [1], [0, 0, 1, 1], [], []>} : vector<16x32xf32>, vector<32x32xf32>, vector<16x32xf32> -> vector<16x32xf32>
    %25 = vector.broadcast %4 : vector<1x32xf32> to vector<16x32xf32>
    %26 = arith.addf %24, %25 : vector<16x32xf32>
    %27 = vector.extract_strided_slice %26 {offsets = [0, 0], sizes = [2, 16], strides = [1, 1]} : vector<16x32xf32> to vector<2x16xf32>
    %28 = vector.extract_strided_slice %26 {offsets = [14, 16], sizes = [2, 16], strides = [1, 1]} : vector<16x32xf32> to vector<2x16xf32>
    %29 = tpu.concatenate %27, %28 in 1 : vector<2x16xf32>, vector<2x16xf32> -> vector<2x32xf32>
    %30 = vector.extract_strided_slice %26 {offsets = [2, 0], sizes = [2, 16], strides = [1, 1]} : vector<16x32xf32> to vector<2x16xf32>
    %31 = vector.extract_strided_slice %26 {offsets = [12, 16], sizes = [2, 16], strides = [1, 1]} : vector<16x32xf32> to vector<2x16xf32>
    %32 = tpu.concatenate %30, %31 in 1 : vector<2x16xf32>, vector<2x16xf32> -> vector<2x32xf32>
    %33 = vector.extract_strided_slice %26 {offsets = [4, 0], sizes = [2, 16], strides = [1, 1]} : vector<16x32xf32> to vector<2x16xf32>
    %34 = vector.extract_strided_slice %26 {offsets = [10, 16], sizes = [2, 16], strides = [1, 1]} : vector<16x32xf32> to vector<2x16xf32>
    %35 = tpu.concatenate %33, %34 in 1 : vector<2x16xf32>, vector<2x16xf32> -> vector<2x32xf32>
    %36 = vector.extract_strided_slice %26 {offsets = [6, 0], sizes = [2, 16], strides = [1, 1]} : vector<16x32xf32> to vector<2x16xf32>
    %37 = vector.extract_strided_slice %26 {offsets = [8, 16], sizes = [2, 16], strides = [1, 1]} : vector<16x32xf32> to vector<2x16xf32>
    %38 = tpu.concatenate %36, %37 in 1 : vector<2x16xf32>, vector<2x16xf32> -> vector<2x32xf32>
    %39 = vector.extract_strided_slice %26 {offsets = [8, 0], sizes = [2, 16], strides = [1, 1]} : vector<16x32xf32> to vector<2x16xf32>
    %40 = vector.extract_strided_slice %26 {offsets = [6, 16], sizes = [2, 16], strides = [1, 1]} : vector<16x32xf32> to vector<2x16xf32>
    %41 = tpu.concatenate %39, %40 in 1 : vector<2x16xf32>, vector<2x16xf32> -> vector<2x32xf32>
    %42 = vector.extract_strided_slice %26 {offsets = [10, 0], sizes = [2, 16], strides = [1, 1]} : vector<16x32xf32> to vector<2x16xf32>
    %43 = vector.extract_strided_slice %26 {offsets = [4, 16], sizes = [2, 16], strides = [1, 1]} : vector<16x32xf32> to vector<2x16xf32>
    %44 = tpu.concatenate %42, %43 in 1 : vector<2x16xf32>, vector<2x16xf32> -> vector<2x32xf32>
    %45 = vector.extract_strided_slice %26 {offsets = [12, 0], sizes = [2, 16], strides = [1, 1]} : vector<16x32xf32> to vector<2x16xf32>
    %46 = vector.extract_strided_slice %26 {offsets = [2, 16], sizes = [2, 16], strides = [1, 1]} : vector<16x32xf32> to vector<2x16xf32>
    %47 = tpu.concatenate %45, %46 in 1 : vector<2x16xf32>, vector<2x16xf32> -> vector<2x32xf32>
    %48 = vector.extract_strided_slice %26 {offsets = [14, 0], sizes = [2, 16], strides = [1, 1]} : vector<16x32xf32> to vector<2x16xf32>
    %49 = vector.extract_strided_slice %26 {offsets = [0, 16], sizes = [2, 16], strides = [1, 1]} : vector<16x32xf32> to vector<2x16xf32>
    %50 = tpu.concatenate %48, %49 in 1 : vector<2x16xf32>, vector<2x16xf32> -> vector<2x32xf32>
    %cst_24 = arith.constant 0.000000e+00 : f32
    %51 = vector.broadcast %cst_24 : f32 to vector<2x32xf32>
    %cst_25 = arith.constant dense<0.000000e+00> : vector<2x32xf32>
    %52 = tpu.matmul %51, %1, %cst_25 {dimension_numbers = #tpu.dot_dimension_numbers<[1], [0], [0], [1], [0, 0, 1, 1], [], []>} : vector<2x32xf32>, vector<32x32xf32>, vector<2x32xf32> -> vector<2x32xf32>
    %53 = arith.addf %29, %52 : vector<2x32xf32>
    %54 = math.tanh %53 : vector<2x32xf32>
    %55 = vector.extract_strided_slice %54 {offsets = [0, 0], sizes = [2, 16], strides = [1, 1]} : vector<2x32xf32> to vector<2x16xf32>
    %c0_26 = arith.constant 0 : index
    %c0_27 = arith.constant 0 : index
    %56 = vector.load %arg5[%c0_26, %c0_27] : memref<16x32xf32, #tpu.memory_space<vmem>>, vector<2x16xf32>
    tpu.vector_store %arg5[%c0_26, %c0_27], %55 {strides = array<i32>} : memref<16x32xf32, #tpu.memory_space<vmem>>, vector<2x16xf32>,
    %57 = vector.extract_strided_slice %54 {offsets = [0, 16], sizes = [2, 16], strides = [1, 1]} : vector<2x32xf32> to vector<2x16xf32>
    %c14_28 = arith.constant 14 : index
    %c16 = arith.constant 16 : index
    %58 = vector.load %arg5[%c14_28, %c16] : memref<16x32xf32, #tpu.memory_space<vmem>>, vector<2x16xf32>
    tpu.vector_store %arg5[%c14_28, %c16], %57 {strides = array<i32>} : memref<16x32xf32, #tpu.memory_space<vmem>>, vector<2x16xf32>,
    %cst_29 = arith.constant dense<0.000000e+00> : vector<2x32xf32>
    %59 = tpu.matmul %54, %1, %cst_29 {dimension_numbers = #tpu.dot_dimension_numbers<[1], [0], [0], [1], [0, 0, 1, 1], [], []>} : vector<2x32xf32>, vector<32x32xf32>, vector<2x32xf32> -> vector<2x32xf32>
    %60 = arith.addf %32, %59 : vector<2x32xf32>
    %61 = math.tanh %60 : vector<2x32xf32>
    %62 = vector.extract_strided_slice %61 {offsets = [0, 0], sizes = [2, 16], strides = [1, 1]} : vector<2x32xf32> to vector<2x16xf32>
    %c2_30 = arith.constant 2 : index
    %c0_31 = arith.constant 0 : index
    %63 = vector.load %arg5[%c2_30, %c0_31] : memref<16x32xf32, #tpu.memory_space<vmem>>, vector<2x16xf32>
    tpu.vector_store %arg5[%c2_30, %c0_31], %62 {strides = array<i32>} : memref<16x32xf32, #tpu.memory_space<vmem>>, vector<2x16xf32>,
    %64 = vector.extract_strided_slice %61 {offsets = [0, 16], sizes = [2, 16], strides = [1, 1]} : vector<2x32xf32> to vector<2x16xf32>
    %c12_32 = arith.constant 12 : index
    %c16_33 = arith.constant 16 : index
    %65 = vector.load %arg5[%c12_32, %c16_33] : memref<16x32xf32, #tpu.memory_space<vmem>>, vector<2x16xf32>
    tpu.vector_store %arg5[%c12_32, %c16_33], %64 {strides = array<i32>} : memref<16x32xf32, #tpu.memory_space<vmem>>, vector<2x16xf32>,
    %cst_34 = arith.constant dense<0.000000e+00> : vector<2x32xf32>
    %66 = tpu.matmul %61, %1, %cst_34 {dimension_numbers = #tpu.dot_dimension_numbers<[1], [0], [0], [1], [0, 0, 1, 1], [], []>} : vector<2x32xf32>, vector<32x32xf32>, vector<2x32xf32> -> vector<2x32xf32>
    %67 = arith.addf %35, %66 : vector<2x32xf32>
    %68 = math.tanh %67 : vector<2x32xf32>
    %69 = vector.extract_strided_slice %68 {offsets = [0, 0], sizes = [2, 16], strides = [1, 1]} : vector<2x32xf32> to vector<2x16xf32>
    %c4_35 = arith.constant 4 : index
    %c0_36 = arith.constant 0 : index
    %70 = vector.load %arg5[%c4_35, %c0_36] : memref<16x32xf32, #tpu.memory_space<vmem>>, vector<2x16xf32>
    tpu.vector_store %arg5[%c4_35, %c0_36], %69 {strides = array<i32>} : memref<16x32xf32, #tpu.memory_space<vmem>>, vector<2x16xf32>,
    %71 = vector.extract_strided_slice %68 {offsets = [0, 16], sizes = [2, 16], strides = [1, 1]} : vector<2x32xf32> to vector<2x16xf32>
    %c10_37 = arith.constant 10 : index
    %c16_38 = arith.constant 16 : index
    %72 = vector.load %arg5[%c10_37, %c16_38] : memref<16x32xf32, #tpu.memory_space<vmem>>, vector<2x16xf32>
    tpu.vector_store %arg5[%c10_37, %c16_38], %71 {strides = array<i32>} : memref<16x32xf32, #tpu.memory_space<vmem>>, vector<2x16xf32>,
    %cst_39 = arith.constant dense<0.000000e+00> : vector<2x32xf32>
    %73 = tpu.matmul %68, %1, %cst_39 {dimension_numbers = #tpu.dot_dimension_numbers<[1], [0], [0], [1], [0, 0, 1, 1], [], []>} : vector<2x32xf32>, vector<32x32xf32>, vector<2x32xf32> -> vector<2x32xf32>
    %74 = arith.addf %38, %73 : vector<2x32xf32>
    %75 = math.tanh %74 : vector<2x32xf32>
    %76 = vector.extract_strided_slice %75 {offsets = [0, 0], sizes = [2, 16], strides = [1, 1]} : vector<2x32xf32> to vector<2x16xf32>
    %c6_40 = arith.constant 6 : index
    %c0_41 = arith.constant 0 : index
    %77 = vector.load %arg5[%c6_40, %c0_41] : memref<16x32xf32, #tpu.memory_space<vmem>>, vector<2x16xf32>
    tpu.vector_store %arg5[%c6_40, %c0_41], %76 {strides = array<i32>} : memref<16x32xf32, #tpu.memory_space<vmem>>, vector<2x16xf32>,
    %78 = vector.extract_strided_slice %75 {offsets = [0, 16], sizes = [2, 16], strides = [1, 1]} : vector<2x32xf32> to vector<2x16xf32>
    %c8_42 = arith.constant 8 : index
    %c16_43 = arith.constant 16 : index
    %79 = vector.load %arg5[%c8_42, %c16_43] : memref<16x32xf32, #tpu.memory_space<vmem>>, vector<2x16xf32>
    tpu.vector_store %arg5[%c8_42, %c16_43], %78 {strides = array<i32>} : memref<16x32xf32, #tpu.memory_space<vmem>>, vector<2x16xf32>,
    %cst_44 = arith.constant dense<0.000000e+00> : vector<2x32xf32>
    %80 = tpu.matmul %75, %1, %cst_44 {dimension_numbers = #tpu.dot_dimension_numbers<[1], [0], [0], [1], [0, 0, 1, 1], [], []>} : vector<2x32xf32>, vector<32x32xf32>, vector<2x32xf32> -> vector<2x32xf32>
    %81 = arith.addf %41, %80 : vector<2x32xf32>
    %82 = math.tanh %81 : vector<2x32xf32>
    %83 = vector.extract_strided_slice %82 {offsets = [0, 0], sizes = [2, 16], strides = [1, 1]} : vector<2x32xf32> to vector<2x16xf32>
    %c8_45 = arith.constant 8 : index
    %c0_46 = arith.constant 0 : index
    %84 = vector.load %arg5[%c8_45, %c0_46] : memref<16x32xf32, #tpu.memory_space<vmem>>, vector<2x16xf32>
    tpu.vector_store %arg5[%c8_45, %c0_46], %83 {strides = array<i32>} : memref<16x32xf32, #tpu.memory_space<vmem>>, vector<2x16xf32>,
    %85 = vector.extract_strided_slice %82 {offsets = [0, 16], sizes = [2, 16], strides = [1, 1]} : vector<2x32xf32> to vector<2x16xf32>
    %c6_47 = arith.constant 6 : index
    %c16_48 = arith.constant 16 : index
    %86 = vector.load %arg5[%c6_47, %c16_48] : memref<16x32xf32, #tpu.memory_space<vmem>>, vector<2x16xf32>
    tpu.vector_store %arg5[%c6_47, %c16_48], %85 {strides = array<i32>} : memref<16x32xf32, #tpu.memory_space<vmem>>, vector<2x16xf32>,
    %cst_49 = arith.constant dense<0.000000e+00> : vector<2x32xf32>
    %87 = tpu.matmul %82, %1, %cst_49 {dimension_numbers = #tpu.dot_dimension_numbers<[1], [0], [0], [1], [0, 0, 1, 1], [], []>} : vector<2x32xf32>, vector<32x32xf32>, vector<2x32xf32> -> vector<2x32xf32>
    %88 = arith.addf %44, %87 : vector<2x32xf32>
    %89 = math.tanh %88 : vector<2x32xf32>
    %90 = vector.extract_strided_slice %89 {offsets = [0, 0], sizes = [2, 16], strides = [1, 1]} : vector<2x32xf32> to vector<2x16xf32>
    %c10_50 = arith.constant 10 : index
    %c0_51 = arith.constant 0 : index
    %91 = vector.load %arg5[%c10_50, %c0_51] : memref<16x32xf32, #tpu.memory_space<vmem>>, vector<2x16xf32>
    tpu.vector_store %arg5[%c10_50, %c0_51], %90 {strides = array<i32>} : memref<16x32xf32, #tpu.memory_space<vmem>>, vector<2x16xf32>,
    %92 = vector.extract_strided_slice %89 {offsets = [0, 16], sizes = [2, 16], strides = [1, 1]} : vector<2x32xf32> to vector<2x16xf32>
    %c4_52 = arith.constant 4 : index
    %c16_53 = arith.constant 16 : index
    %93 = vector.load %arg5[%c4_52, %c16_53] : memref<16x32xf32, #tpu.memory_space<vmem>>, vector<2x16xf32>
    tpu.vector_store %arg5[%c4_52, %c16_53], %92 {strides = array<i32>} : memref<16x32xf32, #tpu.memory_space<vmem>>, vector<2x16xf32>,
    %cst_54 = arith.constant dense<0.000000e+00> : vector<2x32xf32>
    %94 = tpu.matmul %89, %1, %cst_54 {dimension_numbers = #tpu.dot_dimension_numbers<[1], [0], [0], [1], [0, 0, 1, 1], [], []>} : vector<2x32xf32>, vector<32x32xf32>, vector<2x32xf32> -> vector<2x32xf32>
    %95 = arith.addf %47, %94 : vector<2x32xf32>
    %96 = math.tanh %95 : vector<2x32xf32>
    %97 = vector.extract_strided_slice %96 {offsets = [0, 0], sizes = [2, 16], strides = [1, 1]} : vector<2x32xf32> to vector<2x16xf32>
    %c12_55 = arith.constant 12 : index
    %c0_56 = arith.constant 0 : index
    %98 = vector.load %arg5[%c12_55, %c0_56] : memref<16x32xf32, #tpu.memory_space<vmem>>, vector<2x16xf32>
    tpu.vector_store %arg5[%c12_55, %c0_56], %97 {strides = array<i32>} : memref<16x32xf32, #tpu.memory_space<vmem>>, vector<2x16xf32>,
    %99 = vector.extract_strided_slice %96 {offsets = [0, 16], sizes = [2, 16], strides = [1, 1]} : vector<2x32xf32> to vector<2x16xf32>
    %c2_57 = arith.constant 2 : index
    %c16_58 = arith.constant 16 : index
    %100 = vector.load %arg5[%c2_57, %c16_58] : memref<16x32xf32, #tpu.memory_space<vmem>>, vector<2x16xf32>
    tpu.vector_store %arg5[%c2_57, %c16_58], %99 {strides = array<i32>} : memref<16x32xf32, #tpu.memory_space<vmem>>, vector<2x16xf32>,
    %cst_59 = arith.constant dense<0.000000e+00> : vector<2x32xf32>
    %101 = tpu.matmul %96, %1, %cst_59 {dimension_numbers = #tpu.dot_dimension_numbers<[1], [0], [0], [1], [0, 0, 1, 1], [], []>} : vector<2x32xf32>, vector<32x32xf32>, vector<2x32xf32> -> vector<2x32xf32>
    %102 = arith.addf %50, %101 : vector<2x32xf32>
    %103 = math.tanh %102 : vector<2x32xf32>
    %104 = vector.extract_strided_slice %103 {offsets = [0, 0], sizes = [2, 16], strides = [1, 1]} : vector<2x32xf32> to vector<2x16xf32>
    %c14_60 = arith.constant 14 : index
    %c0_61 = arith.constant 0 : index
    %105 = vector.load %arg5[%c14_60, %c0_61] : memref<16x32xf32, #tpu.memory_space<vmem>>, vector<2x16xf32>
    tpu.vector_store %arg5[%c14_60, %c0_61], %104 {strides = array<i32>} : memref<16x32xf32, #tpu.memory_space<vmem>>, vector<2x16xf32>,
    %106 = vector.extract_strided_slice %103 {offsets = [0, 16], sizes = [2, 16], strides = [1, 1]} : vector<2x32xf32> to vector<2x16xf32>
    %c0_62 = arith.constant 0 : index
    %c16_63 = arith.constant 16 : index
    %107 = vector.load %arg5[%c0_62, %c16_63] : memref<16x32xf32, #tpu.memory_space<vmem>>, vector<2x16xf32>
    tpu.vector_store %arg5[%c0_62, %c16_63], %106 {strides = array<i32>} : memref<16x32xf32, #tpu.memory_space<vmem>>, vector<2x16xf32>,
    %c0_64 = arith.constant 0 : index
    %c0_65 = arith.constant 0 : index
    %108 = vector.load %arg5[%c0_64, %c0_65] : memref<16x32xf32, #tpu.memory_space<vmem>>, vector<16x32xf32>
    %cst_66 = arith.constant dense<0.000000e+00> : vector<16x32xf32>
    %109 = tpu.matmul %108, %3, %cst_66 {dimension_numbers = #tpu.dot_dimension_numbers<[1], [0], [0], [1], [0, 0, 1, 1], [], []>} : vector<16x32xf32>, vector<32x32xf32>, vector<16x32xf32> -> vector<16x32xf32>
    %c0_67 = arith.constant 0 : index
    %c0_68 = arith.constant 0 : index
    %110 = vector.load %arg6[%c0_67, %c0_68] : memref<16x32xf32, #tpu.memory_space<vmem>>, vector<16x32xf32>
    %111 = arith.addf %109, %110 : vector<16x32xf32>
    %112 = math.tanh %111 : vector<16x32xf32>
    %113 = vector.broadcast %6 : vector<1x32xf32> to vector<16x32xf32>
    %114 = arith.mulf %112, %113 : vector<16x32xf32>
    %cst_69 = arith.constant dense<0.000000e+00> : vector<16xf32>
    %115 = vector.multi_reduction <add>, %114, %cst_69 [1] : vector<16x32xf32> to vector<16xf32>
    %116 = vector.shape_cast %115 : vector<16xf32> to vector<16x1xf32>
    %117 = vector.broadcast %8 : vector<1x1xf32> to vector<16x1xf32>
    %118 = arith.addf %116, %117 : vector<16x1xf32>
    %119 = math.tanh %118 : vector<16x1xf32>
    %120 = vector.extract_strided_slice %119 {offsets = [0, 0], sizes = [2, 1], strides = [1, 1]} : vector<16x1xf32> to vector<2x1xf32>
    %121 = vector.extract_strided_slice %119 {offsets = [2, 0], sizes = [2, 1], strides = [1, 1]} : vector<16x1xf32> to vector<2x1xf32>
    %122 = vector.extract_strided_slice %119 {offsets = [4, 0], sizes = [2, 1], strides = [1, 1]} : vector<16x1xf32> to vector<2x1xf32>
    %123 = vector.extract_strided_slice %119 {offsets = [6, 0], sizes = [2, 1], strides = [1, 1]} : vector<16x1xf32> to vector<2x1xf32>
    %124 = vector.extract_strided_slice %119 {offsets = [8, 0], sizes = [2, 1], strides = [1, 1]} : vector<16x1xf32> to vector<2x1xf32>
    %125 = vector.extract_strided_slice %119 {offsets = [10, 0], sizes = [2, 1], strides = [1, 1]} : vector<16x1xf32> to vector<2x1xf32>
    %126 = vector.extract_strided_slice %119 {offsets = [12, 0], sizes = [2, 1], strides = [1, 1]} : vector<16x1xf32> to vector<2x1xf32>
    %127 = vector.extract_strided_slice %119 {offsets = [14, 0], sizes = [2, 1], strides = [1, 1]} : vector<16x1xf32> to vector<2x1xf32>
    %128 = arith.maximumf %120, %121 : vector<2x1xf32>
    %129 = arith.maximumf %128, %122 : vector<2x1xf32>
    %130 = arith.maximumf %129, %123 : vector<2x1xf32>
    %131 = arith.maximumf %130, %124 : vector<2x1xf32>
    %132 = arith.maximumf %131, %125 : vector<2x1xf32>
    %133 = arith.maximumf %132, %126 : vector<2x1xf32>
    %134 = arith.maximumf %133, %127 : vector<2x1xf32>
    %135 = arith.subf %120, %134 : vector<2x1xf32>
    %136 = math.exp %135 : vector<2x1xf32>
    %137 = arith.subf %121, %134 : vector<2x1xf32>
    %138 = math.exp %137 : vector<2x1xf32>
    %139 = arith.subf %122, %134 : vector<2x1xf32>
    %140 = math.exp %139 : vector<2x1xf32>
    %141 = arith.subf %123, %134 : vector<2x1xf32>
    %142 = math.exp %141 : vector<2x1xf32>
    %143 = arith.subf %124, %134 : vector<2x1xf32>
    %144 = math.exp %143 : vector<2x1xf32>
    %145 = arith.subf %125, %134 : vector<2x1xf32>
    %146 = math.exp %145 : vector<2x1xf32>
    %147 = arith.subf %126, %134 : vector<2x1xf32>
    %148 = math.exp %147 : vector<2x1xf32>
    %149 = arith.subf %127, %134 : vector<2x1xf32>
    %150 = math.exp %149 : vector<2x1xf32>
    %151 = arith.addf %136, %138 : vector<2x1xf32>
    %152 = arith.addf %151, %140 : vector<2x1xf32>
    %153 = arith.addf %152, %142 : vector<2x1xf32>
    %154 = arith.addf %153, %144 : vector<2x1xf32>
    %155 = arith.addf %154, %146 : vector<2x1xf32>
    %156 = arith.addf %155, %148 : vector<2x1xf32>
    %157 = arith.addf %156, %150 : vector<2x1xf32>
    %cst_70 = arith.constant 1.000000e+00 : f32
    %158 = vector.broadcast %cst_70 : f32 to vector<2x1xf32>
    %159 = arith.divf %158, %157 : vector<2x1xf32>
    %160 = arith.mulf %136, %159 : vector<2x1xf32>
    %161 = vector.extract_strided_slice %108 {offsets = [0, 0], sizes = [2, 32], strides = [1, 1]} : vector<16x32xf32> to vector<2x32xf32>
    %162 = vector.broadcast %160 : vector<2x1xf32> to vector<2x32xf32>
    %163 = arith.mulf %162, %161 : vector<2x32xf32>
    %164 = arith.mulf %138, %159 : vector<2x1xf32>
    %165 = vector.extract_strided_slice %108 {offsets = [2, 0], sizes = [2, 32], strides = [1, 1]} : vector<16x32xf32> to vector<2x32xf32>
    %166 = vector.broadcast %164 : vector<2x1xf32> to vector<2x32xf32>
    %167 = arith.mulf %166, %165 : vector<2x32xf32>
    %168 = arith.addf %163, %167 : vector<2x32xf32>
    %169 = arith.mulf %140, %159 : vector<2x1xf32>
    %170 = vector.extract_strided_slice %108 {offsets = [4, 0], sizes = [2, 32], strides = [1, 1]} : vector<16x32xf32> to vector<2x32xf32>
    %171 = vector.broadcast %169 : vector<2x1xf32> to vector<2x32xf32>
    %172 = arith.mulf %171, %170 : vector<2x32xf32>
    %173 = arith.addf %168, %172 : vector<2x32xf32>
    %174 = arith.mulf %142, %159 : vector<2x1xf32>
    %175 = vector.extract_strided_slice %108 {offsets = [6, 0], sizes = [2, 32], strides = [1, 1]} : vector<16x32xf32> to vector<2x32xf32>
    %176 = vector.broadcast %174 : vector<2x1xf32> to vector<2x32xf32>
    %177 = arith.mulf %176, %175 : vector<2x32xf32>
    %178 = arith.addf %173, %177 : vector<2x32xf32>
    %179 = arith.mulf %144, %159 : vector<2x1xf32>
    %180 = vector.extract_strided_slice %108 {offsets = [8, 0], sizes = [2, 32], strides = [1, 1]} : vector<16x32xf32> to vector<2x32xf32>
    %181 = vector.broadcast %179 : vector<2x1xf32> to vector<2x32xf32>
    %182 = arith.mulf %181, %180 : vector<2x32xf32>
    %183 = arith.addf %178, %182 : vector<2x32xf32>
    %184 = arith.mulf %146, %159 : vector<2x1xf32>
    %185 = vector.extract_strided_slice %108 {offsets = [10, 0], sizes = [2, 32], strides = [1, 1]} : vector<16x32xf32> to vector<2x32xf32>
    %186 = vector.broadcast %184 : vector<2x1xf32> to vector<2x32xf32>
    %187 = arith.mulf %186, %185 : vector<2x32xf32>
    %188 = arith.addf %183, %187 : vector<2x32xf32>
    %189 = arith.mulf %148, %159 : vector<2x1xf32>
    %190 = vector.extract_strided_slice %108 {offsets = [12, 0], sizes = [2, 32], strides = [1, 1]} : vector<16x32xf32> to vector<2x32xf32>
    %191 = vector.broadcast %189 : vector<2x1xf32> to vector<2x32xf32>
    %192 = arith.mulf %191, %190 : vector<2x32xf32>
    %193 = arith.addf %188, %192 : vector<2x32xf32>
    %194 = arith.mulf %150, %159 : vector<2x1xf32>
    %195 = vector.extract_strided_slice %108 {offsets = [14, 0], sizes = [2, 32], strides = [1, 1]} : vector<16x32xf32> to vector<2x32xf32>
    %196 = vector.broadcast %194 : vector<2x1xf32> to vector<2x32xf32>
    %197 = arith.mulf %196, %195 : vector<2x32xf32>
    %198 = arith.addf %193, %197 : vector<2x32xf32>
    %c0_71 = arith.constant 0 : index
    %c0_72 = arith.constant 0 : index
    %c0_73 = arith.constant 0 : index
    %199 = vector.load %arg4[%c0_71, %c0_72, %c0_73] : memref<1x2x32xf32, #tpu.memory_space<vmem>>, vector<1x2x32xf32>
    %200 = vector.shape_cast %199 : vector<1x2x32xf32> to vector<2x32xf32>
    %201 = vector.shape_cast %198 : vector<2x32xf32> to vector<1x2x32xf32>
    tpu.vector_store %arg4[%c0_71, %c0_72, %c0_73], %201 {strides = array<i32>} : memref<1x2x32xf32, #tpu.memory_space<vmem>>, vector<1x2x32xf32>,
    return
  }
  func.func @transform_0(%arg0: i32) -> (i32, i32, i32) {
    %c0_i32 = arith.constant 0 : i32
    %c0_i32_0 = arith.constant 0 : i32
    %c0_i32_1 = arith.constant 0 : i32
    return %arg0, %c0_i32, %c0_i32_0 : i32, i32, i32
  }
  func.func @transform_1(%arg0: i32) -> (i32, i32, i32) {
    %c0_i32 = arith.constant 0 : i32
    %c0_i32_0 = arith.constant 0 : i32
    %c0_i32_1 = arith.constant 0 : i32
    return %arg0, %c0_i32, %c0_i32_0 : i32, i32, i32
  }
  func.func @transform_2(%arg0: i32) -> (i32, i32) {
    %c0_i32 = arith.constant 0 : i32
    %c0_i32_0 = arith.constant 0 : i32
    %c0_i32_1 = arith.constant 0 : i32
    return %c0_i32, %c0_i32_0 : i32, i32
  }
  func.func @transform_3(%arg0: i32) -> (i32, i32, i32) {
    %c0_i32 = arith.constant 0 : i32
    %c0_i32_0 = arith.constant 0 : i32
    %c0_i32_1 = arith.constant 0 : i32
    return %arg0, %c0_i32, %c0_i32_0 : i32, i32, i32
  }
}

</mosaic_0001>

<llo_original>
// kernel: temporal_attention.1
$region0: #{temporal_attention.1}
  #allocation0 [shape = 'u32[]', space=smem, size = 0x4, offset = 0x4, fixed_abs, tag = 'smem constant byte address 0x4 - core index']
  #allocation1 [shape = 'u32[144,128]{1,0:T(1,128)}', space=vmem, size = 0x12000, scoped, tag = 'internal scratch']
  #allocation2 [shape = 'f32[16,32]{1,0:T(8,128)}', space=vmem, size = 0x2000, scoped, tag = 'scratch operand']
  #allocation3 [shape = 'f32[16,32]{1,0:T(8,128)}', space=vmem, size = 0x2000, scoped, tag = 'scratch operand']
  %s0 = inlined_call_operand.vmem [shape: f32[1,16,32], index: 0, kind: input, shape index: {}]
  %s1 = inlined_call_operand.vmem [shape: f32[1,2,32], index: 1, kind: input, shape index: {}]
  %s2 = inlined_call_operand.vmem [shape: f32[160,32], index: 2, kind: input, shape index: {}]
  %s3 = inlined_call_operand.hbm [shape: f32[1,2,32], index: 3, kind: output, shape index: {}]
  %s4 = sld [smem:[#allocation0]]
  $region22: #{temporal_attention.1} parent=0
    _
  %s6 = ssub.s32 1, %s4
  %s7 = scalar_select 0, %s6, %s4
  $region1: #{temporal_attention.1} parent=0
    #allocation4 [shape = 'u8[1024]{0}', space=vmem, size = 0x400, scoped, tag = 'output window, operand 0, single buffered']
    #allocation5 [shape = 's32[1]{0}', space=sflag, size = 0x4, scoped, tag = 'scoped memory for temporal_attention.1']
    %8 = vsyncpa [#allocation5], 0
    // Predicated region
    $region2: #{temporal_attention.1} parent=1 // pred_check
      _
    $region3: #{temporal_attention.1} parent=1 // pred_check_branch
      %10 = sbr.rel (0) target = $region5
    $region4: #{temporal_attention.1} parent=1 // pred_region
      _
    $region5: #{temporal_attention.1} parent=1 // pred_fallthru
      _
    // Predicated region
    $region6: #{temporal_attention.1} parent=1 // pred_check
      _
    $region7: #{temporal_attention.1} parent=1 // pred_check_branch
      %12 = sbr.rel (0) target = $region9
    $region8: #{temporal_attention.1} parent=1 // pred_region
      _
    $region9: #{temporal_attention.1} parent=1 // pred_fallthru
      _
    // Predicated region
    $region10: #{temporal_attention.1} parent=1 // pred_check
      _
    $region11: #{temporal_attention.1} parent=1 // pred_check_branch
      %14 = sbr.rel (0) target = $region13
    $region12: #{temporal_attention.1} parent=1 // pred_region
      _
    $region13: #{temporal_attention.1} parent=1 // pred_fallthru
      _
    %v15 = vld [vmem:[%s2] sm:$0xff]
    %v16 = vld [vmem:[%s2 + $0x8] sm:$0xff]
    %v17 = vld [vmem:[%s2 + $0x10] sm:$0xff]
    %v18 = vld [vmem:[%s2 + $0x18] sm:$0xff]
    %v19 = vld [vmem:[%s2 + $0x20] sm:$0xff]
    %v20 = vld [vmem:[%s2 + $0x28] sm:$0xff]
    %v21 = vld [vmem:[%s2 + $0x30] sm:$0xff]
    %v22 = vld [vmem:[%s2 + $0x38] sm:$0xff]
    %v23 = vld [vmem:[%s2 + $0x40] sm:$0xff]
    %v24 = vld [vmem:[%s2 + $0x48] sm:$0xff]
    %v25 = vld [vmem:[%s2 + $0x50] sm:$0xff]
    %v26 = vld [vmem:[%s2 + $0x58] sm:$0xff]
    %v27 = vld [vmem:[%s2 + $0x60] sm:$0xff]
    %v28 = vld [vmem:[%s2 + $0x68] sm:$0xff]
    %v29 = vld [vmem:[%s2 + $0x70] sm:$0xff]
    %v30 = vld [vmem:[%s2 + $0x78] sm:$0xff]
    %v31 = vld [vmem:[%s2 + $0x80] sm:$0x1]
    %v32 = vld [vmem:[%s2 + $0x88] sm:$0x1]
    %v33 = vld [vmem:[%s2 + $0x90] sm:$0x1]
    %v34 = vld [vmem:[%s2 + $0x98] sm:$0x1]
    %v35 = vld [vmem:[%s1] sm:$0x3]
    %v36 = vlaneseq
    %v37 = vshrl.u32 %v36, 7
    %v38 = vsub.s32 0, %v37
    %v39 = vrot.slane %v32, %v38
    %vm40 = vcmask 261120
    %v42 = vsel %vm40, %v35, 0
    %44 = vmatprep.subr.mxu0 0.0
    %45 = vmatpush1.msra.mxu0 %v23
    %46 = vmatprep.subr.mxu0 0.0
    %47 = vmatpush1.msra.mxu0 %v24
    %48 = vmatprep.subr.mxu0 0.0
    %49 = vmatpush1.msra.mxu0 %v25
    %50 = vmatprep.subr.mxu0 0.0
    %51 = vmatpush1.msra.mxu0 %v26
    %52 = vmatprep.subr.mxu0 0.0
    %53 = vmatpush1.msra.mxu0 0.0
    %54 = vmatprep.subr.mxu0 0.0
    %55 = vmatpush1.msra.mxu0 0.0
    %56 = vmatprep.subr.mxu0 0.0
    %57 = vmatpush1.msra.mxu0 0.0
    %58 = vmatprep.subr.mxu0 0.0
    %59 = vmatpush1.msra.mxu0 0.0
    %60 = vmatprep.subr.mxu0 0.0
    %61 = vmatpush1.msra.mxu0 0.0
    %62 = vmatprep.subr.mxu0 0.0
    %63 = vmatpush1.msra.mxu0 0.0
    %64 = vmatprep.subr.mxu0 0.0
    %65 = vmatpush1.msra.mxu0 0.0
    %66 = vmatprep.subr.mxu0 0.0
    %67 = vmatpush1.msra.mxu0 0.0
    %68 = vmatprep.subr.mxu0 0.0
    %69 = vmatpush1.msra.mxu0 0.0
    %70 = vmatprep.subr.mxu0 0.0
    %71 = vmatpush1.msra.mxu0 0.0
    %72 = vmatprep.subr.mxu0 0.0
    %73 = vmatpush1.msra.mxu0 0.0
    %74 = vmatprep.subr.mxu0 0.0
    %75 = vmatpush1.msra.mxu0 0.0
    %76 = vmatprep.subr.mxu0 0.0
    %77 = vmatpush1.msra.mxu0 0.0
    %78 = vmatprep.subr.mxu0 0.0
    %79 = vmatpush1.msra.mxu0 0.0
    %80 = vmatprep.subr.mxu0 0.0
    %81 = vmatpush1.msra.mxu0 0.0
    %82 = vmatprep.subr.mxu0 0.0
    %83 = vmatpush1.msra.mxu0 0.0
    %84 = vmatprep.subr.mxu0 0.0
    %85 = vmatpush1.msra.mxu0 0.0
    %86 = vmatprep.subr.mxu0 0.0
    %87 = vmatpush1.msra.mxu0 0.0
    %88 = vmatprep.subr.mxu0 0.0
    %89 = vmatpush1.msra.mxu0 0.0
    %90 = vmatprep.subr.mxu0 0.0
    %91 = vmatpush1.msra.mxu0 0.0
    %92 = vmatprep.subr.mxu0 0.0
    %93 = vmatpush1.msra.mxu0 0.0
    %94 = vmatprep.subr.mxu0 0.0
    %95 = vmatpush1.msra.mxu0 0.0
    %96 = vmatprep.subr.mxu0 0.0
    %97 = vmatpush1.msra.mxu0 0.0
    %98 = vmatprep.subr.mxu0 0.0
    %99 = vmatpush1.msra.mxu0 0.0
    %100 = vmatprep.subr.mxu0 0.0
    %101 = vmatpush1.msra.mxu0 0.0
    %102 = vmatprep.subr.mxu0 0.0
    %103 = vmatpush1.msra.mxu0 0.0
    %104 = vmatprep.subr.mxu0 0.0
    %105 = vmatpush1.msra.mxu0 0.0
    %106 = vmatprep.subr.mxu0 0.0
    %107 = vmatpush1.msra.mxu0 0.0
    %108 = vmatprep.mubr.f32.mxu0 0.0
    %109 = vmatmul.mubr.f32.gmra.mrb[0].mxu0 %v42
    %v110 = vpop.f32.mrb[0].mxu0
    %v111 = vadd.f32 %v39, %v110
    %v112 = vpop.f32.mrb[0].mxu0
    %113 = vdwg.mxu0
    %vm114 = vcmask 254976
    %115 = vst.msk [vmem:[#allocation3] sm:$0x3] %vm114, %v111
    %116 = vst.msk [vmem:[#allocation3 + $0x2] sm:$0x3] %vm114, %v111
    %117 = vst.msk [vmem:[#allocation3 + $0x4] sm:$0x3] %vm114, %v111
    %118 = vst.msk [vmem:[#allocation3 + $0x6] sm:$0x3] %vm114, %v111
    %119 = vst.msk [vmem:[#allocation3 + $0x8] sm:$0x3] %vm114, %v111
    %120 = vst.msk [vmem:[#allocation3 + $0xa] sm:$0x3] %vm114, %v111
    %121 = vst.msk [vmem:[#allocation3 + $0xc] sm:$0x3] %vm114, %v111
    %122 = vst.msk [vmem:[#allocation3 + $0xe] sm:$0x3] %vm114, %v111
    %v123 = vld [vmem:[%s0] sm:$0xff]
    %v124 = vld [vmem:[%s0 + $0x8] sm:$0xff]
    %v125 = vlaneseq
    %v126 = vshrl.u32 %v125, 7
    %v127 = vsub.s32 0, %v126
    %v128 = vrot.slane %v31, %v127
    %v130 = vsel %vm40, %v123, 0
    %v133 = vsel %vm40, %v124, 0
    %135 = vmatprep.subr.mxu0 0.0
    %136 = vmatpush1.msra.mxu0 %v15
    %137 = vmatprep.subr.mxu0 0.0
    %138 = vmatpush1.msra.mxu0 %v16
    %139 = vmatprep.subr.mxu0 0.0
    %140 = vmatpush1.msra.mxu0 %v17
    %141 = vmatprep.subr.mxu0 0.0
    %142 = vmatpush1.msra.mxu0 %v18
    %143 = vmatprep.subr.mxu0 0.0
    %144 = vmatpush1.msra.mxu0 0.0
    %145 = vmatprep.subr.mxu0 0.0
    %146 = vmatpush1.msra.mxu0 0.0
    %147 = vmatprep.subr.mxu0 0.0
    %148 = vmatpush1.msra.mxu0 0.0
    %149 = vmatprep.subr.mxu0 0.0
    %150 = vmatpush1.msra.mxu0 0.0
    %151 = vmatprep.subr.mxu0 0.0
    %152 = vmatpush1.msra.mxu0 0.0
    %153 = vmatprep.subr.mxu0 0.0
    %154 = vmatpush1.msra.mxu0 0.0
    %155 = vmatprep.subr.mxu0 0.0
    %156 = vmatpush1.msra.mxu0 0.0
    %157 = vmatprep.subr.mxu0 0.0
    %158 = vmatpush1.msra.mxu0 0.0
    %159 = vmatprep.subr.mxu0 0.0
    %160 = vmatpush1.msra.mxu0 0.0
    %161 = vmatprep.subr.mxu0 0.0
    %162 = vmatpush1.msra.mxu0 0.0
    %163 = vmatprep.subr.mxu0 0.0
    %164 = vmatpush1.msra.mxu0 0.0
    %165 = vmatprep.subr.mxu0 0.0
    %166 = vmatpush1.msra.mxu0 0.0
    %167 = vmatprep.subr.mxu0 0.0
    %168 = vmatpush1.msra.mxu0 0.0
    %169 = vmatprep.subr.mxu0 0.0
    %170 = vmatpush1.msra.mxu0 0.0
    %171 = vmatprep.subr.mxu0 0.0
    %172 = vmatpush1.msra.mxu0 0.0
    %173 = vmatprep.subr.mxu0 0.0
    %174 = vmatpush1.msra.mxu0 0.0
    %175 = vmatprep.subr.mxu0 0.0
    %176 = vmatpush1.msra.mxu0 0.0
    %177 = vmatprep.subr.mxu0 0.0
    %178 = vmatpush1.msra.mxu0 0.0
    %179 = vmatprep.subr.mxu0 0.0
    %180 = vmatpush1.msra.mxu0 0.0
    %181 = vmatprep.subr.mxu0 0.0
    %182 = vmatpush1.msra.mxu0 0.0
    %183 = vmatprep.subr.mxu0 0.0
    %184 = vmatpush1.msra.mxu0 0.0
    %185 = vmatprep.subr.mxu0 0.0
    %186 = vmatpush1.msra.mxu0 0.0
    %187 = vmatprep.subr.mxu0 0.0
    %188 = vmatpush1.msra.mxu0 0.0
    %189 = vmatprep.subr.mxu0 0.0
    %190 = vmatpush1.msra.mxu0 0.0
    %191 = vmatprep.subr.mxu0 0.0
    %192 = vmatpush1.msra.mxu0 0.0
    %193 = vmatprep.subr.mxu0 0.0
    %194 = vmatpush1.msra.mxu0 0.0
    %195 = vmatprep.subr.mxu0 0.0
    %196 = vmatpush1.msra.mxu0 0.0
    %197 = vmatprep.subr.mxu0 0.0
    %198 = vmatpush1.msra.mxu0 0.0
    %199 = vmatprep.mubr.f32.mxu0 0.0
    %200 = vmatmul.mubr.f32.gmra.mrb[0].mxu0 %v130
    %v201 = vpop.f32.mrb[0].mxu0
    %v202 = vadd.f32 %v128, %v201
    %v203 = vpop.f32.mrb[0].mxu0
    %204 = vmatprep.mubr.f32.mxu0 0.0
    %205 = vmatmul.mubr.f32.gmra.mrb[0].mxu0 %v133
    %v206 = vpop.f32.mrb[0].mxu0
    %v207 = vadd.f32 %v128, %v206
    %v208 = vpop.f32.mrb[0].mxu0
    %209 = vdwg.mxu0
    %v211 = vrot.slane %v207, 6
    %vm213 = vcmask 130048
    %v214 = vsel %vm213, %v202, %v211
    %v215 = vrot.slane %v207, 2
    %v217 = vsel %vm213, %v202, %v215
    %v219 = vrot.slane %v202, 6
    %v221 = vsel %vm213, %v207, %v219
    %v222 = vrot.slane %v202, 2
    %v224 = vsel %vm213, %v207, %v222
    %v226 = vsel %vm40, 0.0, 0
    %228 = vmatprep.subr.mxu0 0.0
    %229 = vmatpush1.msra.mxu0 %v19
    %230 = vmatprep.subr.mxu0 0.0
    %231 = vmatpush1.msra.mxu0 %v20
    %232 = vmatprep.subr.mxu0 0.0
    %233 = vmatpush1.msra.mxu0 %v21
    %234 = vmatprep.subr.mxu0 0.0
    %235 = vmatpush1.msra.mxu0 %v22
    %236 = vmatprep.subr.mxu0 0.0
    %237 = vmatpush1.msra.mxu0 0.0
    %238 = vmatprep.subr.mxu0 0.0
    %239 = vmatpush1.msra.mxu0 0.0
    %240 = vmatprep.subr.mxu0 0.0
    %241 = vmatpush1.msra.mxu0 0.0
    %242 = vmatprep.subr.mxu0 0.0
    %243 = vmatpush1.msra.mxu0 0.0
    %244 = vmatprep.subr.mxu0 0.0
    %245 = vmatpush1.msra.mxu0 0.0
    %246 = vmatprep.subr.mxu0 0.0
    %247 = vmatpush1.msra.mxu0 0.0
    %248 = vmatprep.subr.mxu0 0.0
    %249 = vmatpush1.msra.mxu0 0.0
    %250 = vmatprep.subr.mxu0 0.0
    %251 = vmatpush1.msra.mxu0 0.0
    %252 = vmatprep.subr.mxu0 0.0
    %253 = vmatpush1.msra.mxu0 0.0
    %254 = vmatprep.subr.mxu0 0.0
    %255 = vmatpush1.msra.mxu0 0.0
    %256 = vmatprep.subr.mxu0 0.0
    %257 = vmatpush1.msra.mxu0 0.0
    %258 = vmatprep.subr.mxu0 0.0
    %259 = vmatpush1.msra.mxu0 0.0
    %260 = vmatprep.subr.mxu0 0.0
    %261 = vmatpush1.msra.mxu0 0.0
    %262 = vmatprep.subr.mxu0 0.0
    %263 = vmatpush1.msra.mxu0 0.0
    %264 = vmatprep.subr.mxu0 0.0
    %265 = vmatpush1.msra.mxu0 0.0
    %266 = vmatprep.subr.mxu0 0.0
    %267 = vmatpush1.msra.mxu0 0.0
    %268 = vmatprep.subr.mxu0 0.0
    %269 = vmatpush1.msra.mxu0 0.0
    %270 = vmatprep.subr.mxu0 0.0
    %271 = vmatpush1.msra.mxu0 0.0
    %272 = vmatprep.subr.mxu0 0.0
    %273 = vmatpush1.msra.mxu0 0.0
    %274 = vmatprep.subr.mxu0 0.0
    %275 = vmatpush1.msra.mxu0 0.0
    %276 = vmatprep.subr.mxu0 0.0
    %277 = vmatpush1.msra.mxu0 0.0
    %278 = vmatprep.subr.mxu0 0.0
    %279 = vmatpush1.msra.mxu0 0.0
    %280 = vmatprep.subr.mxu0 0.0
    %281 = vmatpush1.msra.mxu0 0.0
    %282 = vmatprep.subr.mxu0 0.0
    %283 = vmatpush1.msra.mxu0 0.0
    %284 = vmatprep.subr.mxu0 0.0
    %285 = vmatpush1.msra.mxu0 0.0
    %286 = vmatprep.subr.mxu0 0.0
    %287 = vmatpush1.msra.mxu0 0.0
    %288 = vmatprep.subr.mxu0 0.0
    %289 = vmatpush1.msra.mxu0 0.0
    %290 = vmatprep.subr.mxu0 0.0
    %291 = vmatpush1.msra.mxu0 0.0
    %292 = vmatprep.mubr.f32.mxu0 0.0
    %293 = vmatmul.mubr.f32.gmra.mrb[0].mxu0 %v226
    %v294 = vpop.f32.mrb[0].mxu0
    %v295 = vadd.f32 0.0, %v294
    %v296 = vpop.f32.mrb[0].mxu0
    %297 = vdwg.mxu0
    %v298 = vadd.f32 %v214, %v295
    %v299 = vtanh.pop %v298
    %vm300 = vcmask 123904
    %301 = vst.msk [vmem:[#allocation2] sm:$0x3] %vm300, %v299
    %vm302 = vcmask 255104
    %303 = vst.msk [vmem:[#allocation2 + $0xe] sm:$0x3] %vm302, %v299
    %v305 = vsel %vm40, %v299, 0
    %307 = vmatprep.subr.mxu0 0.0
    %308 = vmatpush1.msra.mxu0 %v19
    %309 = vmatprep.subr.mxu0 0.0
    %310 = vmatpush1.msra.mxu0 %v20
    %311 = vmatprep.subr.mxu0 0.0
    %312 = vmatpush1.msra.mxu0 %v21
    %313 = vmatprep.subr.mxu0 0.0
    %314 = vmatpush1.msra.mxu0 %v22
    %315 = vmatprep.subr.mxu0 0.0
    %316 = vmatpush1.msra.mxu0 0.0
    %317 = vmatprep.subr.mxu0 0.0
    %318 = vmatpush1.msra.mxu0 0.0
    %319 = vmatprep.subr.mxu0 0.0
    %320 = vmatpush1.msra.mxu0 0.0
    %321 = vmatprep.subr.mxu0 0.0
    %322 = vmatpush1.msra.mxu0 0.0
    %323 = vmatprep.subr.mxu0 0.0
    %324 = vmatpush1.msra.mxu0 0.0
    %325 = vmatprep.subr.mxu0 0.0
    %326 = vmatpush1.msra.mxu0 0.0
    %327 = vmatprep.subr.mxu0 0.0
    %328 = vmatpush1.msra.mxu0 0.0
    %329 = vmatprep.subr.mxu0 0.0
    %330 = vmatpush1.msra.mxu0 0.0
    %331 = vmatprep.subr.mxu0 0.0
    %332 = vmatpush1.msra.mxu0 0.0
    %333 = vmatprep.subr.mxu0 0.0
    %334 = vmatpush1.msra.mxu0 0.0
    %335 = vmatprep.subr.mxu0 0.0
    %336 = vmatpush1.msra.mxu0 0.0
    %337 = vmatprep.subr.mxu0 0.0
    %338 = vmatpush1.msra.mxu0 0.0
    %339 = vmatprep.subr.mxu0 0.0
    %340 = vmatpush1.msra.mxu0 0.0
    %341 = vmatprep.subr.mxu0 0.0
    %342 = vmatpush1.msra.mxu0 0.0
    %343 = vmatprep.subr.mxu0 0.0
    %344 = vmatpush1.msra.mxu0 0.0
    %345 = vmatprep.subr.mxu0 0.0
    %346 = vmatpush1.msra.mxu0 0.0
    %347 = vmatprep.subr.mxu0 0.0
    %348 = vmatpush1.msra.mxu0 0.0
    %349 = vmatprep.subr.mxu0 0.0
    %350 = vmatpush1.msra.mxu0 0.0
    %351 = vmatprep.subr.mxu0 0.0
    %352 = vmatpush1.msra.mxu0 0.0
    %353 = vmatprep.subr.mxu0 0.0
    %354 = vmatpush1.msra.mxu0 0.0
    %355 = vmatprep.subr.mxu0 0.0
    %356 = vmatpush1.msra.mxu0 0.0
    %357 = vmatprep.subr.mxu0 0.0
    %358 = vmatpush1.msra.mxu0 0.0
    %359 = vmatprep.subr.mxu0 0.0
    %360 = vmatpush1.msra.mxu0 0.0
    %361 = vmatprep.subr.mxu0 0.0
    %362 = vmatpush1.msra.mxu0 0.0
    %363 = vmatprep.subr.mxu0 0.0
    %364 = vmatpush1.msra.mxu0 0.0
    %365 = vmatprep.subr.mxu0 0.0
    %366 = vmatpush1.msra.mxu0 0.0
    %367 = vmatprep.subr.mxu0 0.0
    %368 = vmatpush1.msra.mxu0 0.0
    %369 = vmatprep.subr.mxu0 0.0
    %370 = vmatpush1.msra.mxu0 0.0
    %371 = vmatprep.mubr.f32.mxu0 0.0
    %372 = vmatmul.mubr.f32.gmra.mrb[0].mxu0 %v305
    %v373 = vpop.f32.mrb[0].mxu0
    %v374 = vadd.f32 0.0, %v373
    %v375 = vpop.f32.mrb[0].mxu0
    %376 = vdwg.mxu0
    %v378 = vrot.slane %v374, 6
    %v380 = vadd.f32 %v217, %v378
    %v381 = vtanh.pop %v380
    %vm382 = vcmask 125954
    %383 = vst.msk [vmem:[#allocation2] sm:$0xc] %vm382, %v381
    %vm384 = vcmask 257154
    %385 = vst.msk [vmem:[#allocation2 + $0xa] sm:$0xc] %vm384, %v381
    %v387 = vrot.slane %v381, 2
    %v388 = vsel %vm40, %v387, 0
    %390 = vmatprep.subr.mxu0 0.0
    %391 = vmatpush1.msra.mxu0 %v19
    %392 = vmatprep.subr.mxu0 0.0
    %393 = vmatpush1.msra.mxu0 %v20
    %394 = vmatprep.subr.mxu0 0.0
    %395 = vmatpush1.msra.mxu0 %v21
    %396 = vmatprep.subr.mxu0 0.0
    %397 = vmatpush1.msra.mxu0 %v22
    %398 = vmatprep.subr.mxu0 0.0
    %399 = vmatpush1.msra.mxu0 0.0
    %400 = vmatprep.subr.mxu0 0.0
    %401 = vmatpush1.msra.mxu0 0.0
    %402 = vmatprep.subr.mxu0 0.0
    %403 = vmatpush1.msra.mxu0 0.0
    %404 = vmatprep.subr.mxu0 0.0
    %405 = vmatpush1.msra.mxu0 0.0
    %406 = vmatprep.subr.mxu0 0.0
    %407 = vmatpush1.msra.mxu0 0.0
    %408 = vmatprep.subr.mxu0 0.0
    %409 = vmatpush1.msra.mxu0 0.0
    %410 = vmatprep.subr.mxu0 0.0
    %411 = vmatpush1.msra.mxu0 0.0
    %412 = vmatprep.subr.mxu0 0.0
    %413 = vmatpush1.msra.mxu0 0.0
    %414 = vmatprep.subr.mxu0 0.0
    %415 = vmatpush1.msra.mxu0 0.0
    %416 = vmatprep.subr.mxu0 0.0
    %417 = vmatpush1.msra.mxu0 0.0
    %418 = vmatprep.subr.mxu0 0.0
    %419 = vmatpush1.msra.mxu0 0.0
    %420 = vmatprep.subr.mxu0 0.0
    %421 = vmatpush1.msra.mxu0 0.0
    %422 = vmatprep.subr.mxu0 0.0
    %423 = vmatpush1.msra.mxu0 0.0
    %424 = vmatprep.subr.mxu0 0.0
    %425 = vmatpush1.msra.mxu0 0.0
    %426 = vmatprep.subr.mxu0 0.0
    %427 = vmatpush1.msra.mxu0 0.0
    %428 = vmatprep.subr.mxu0 0.0
    %429 = vmatpush1.msra.mxu0 0.0
    %430 = vmatprep.subr.mxu0 0.0
    %431 = vmatpush1.msra.mxu0 0.0
    %432 = vmatprep.subr.mxu0 0.0
    %433 = vmatpush1.msra.mxu0 0.0
    %434 = vmatprep.subr.mxu0 0.0
    %435 = vmatpush1.msra.mxu0 0.0
    %436 = vmatprep.subr.mxu0 0.0
    %437 = vmatpush1.msra.mxu0 0.0
    %438 = vmatprep.subr.mxu0 0.0
    %439 = vmatpush1.msra.mxu0 0.0
    %440 = vmatprep.subr.mxu0 0.0
    %441 = vmatpush1.msra.mxu0 0.0
    %442 = vmatprep.subr.mxu0 0.0
    %443 = vmatpush1.msra.mxu0 0.0
    %444 = vmatprep.subr.mxu0 0.0
    %445 = vmatpush1.msra.mxu0 0.0
    %446 = vmatprep.subr.mxu0 0.0
    %447 = vmatpush1.msra.mxu0 0.0
    %448 = vmatprep.subr.mxu0 0.0
    %449 = vmatpush1.msra.mxu0 0.0
    %450 = vmatprep.subr.mxu0 0.0
    %451 = vmatpush1.msra.mxu0 0.0
    %452 = vmatprep.subr.mxu0 0.0
    %453 = vmatpush1.msra.mxu0 0.0
    %454 = vmatprep.mubr.f32.mxu0 0.0
    %455 = vmatmul.mubr.f32.gmra.mrb[0].mxu0 %v388
    %v456 = vpop.f32.mrb[0].mxu0
    %v457 = vadd.f32 0.0, %v456
    %v458 = vpop.f32.mrb[0].mxu0
    %459 = vdwg.mxu0
    %v461 = vrot.slane %v457, 4
    %v463 = vadd.f32 %v214, %v461
    %v464 = vtanh.pop %v463
    %vm465 = vcmask 128004
    %466 = vst.msk [vmem:[#allocation2] sm:$0x30] %vm465, %v464
    %vm467 = vcmask 259204
    %468 = vst.msk [vmem:[#allocation2 + $0x6] sm:$0x30] %vm467, %v464
    %v470 = vrot.slane %v464, 4
    %v471 = vsel %vm40, %v470, 0
    %473 = vmatprep.subr.mxu0 0.0
    %474 = vmatpush1.msra.mxu0 %v19
    %475 = vmatprep.subr.mxu0 0.0
    %476 = vmatpush1.msra.mxu0 %v20
    %477 = vmatprep.subr.mxu0 0.0
    %478 = vmatpush1.msra.mxu0 %v21
    %479 = vmatprep.subr.mxu0 0.0
    %480 = vmatpush1.msra.mxu0 %v22
    %481 = vmatprep.subr.mxu0 0.0
    %482 = vmatpush1.msra.mxu0 0.0
    %483 = vmatprep.subr.mxu0 0.0
    %484 = vmatpush1.msra.mxu0 0.0
    %485 = vmatprep.subr.mxu0 0.0
    %486 = vmatpush1.msra.mxu0 0.0
    %487 = vmatprep.subr.mxu0 0.0
    %488 = vmatpush1.msra.mxu0 0.0
    %489 = vmatprep.subr.mxu0 0.0
    %490 = vmatpush1.msra.mxu0 0.0
    %491 = vmatprep.subr.mxu0 0.0
    %492 = vmatpush1.msra.mxu0 0.0
    %493 = vmatprep.subr.mxu0 0.0
    %494 = vmatpush1.msra.mxu0 0.0
    %495 = vmatprep.subr.mxu0 0.0
    %496 = vmatpush1.msra.mxu0 0.0
    %497 = vmatprep.subr.mxu0 0.0
    %498 = vmatpush1.msra.mxu0 0.0
    %499 = vmatprep.subr.mxu0 0.0
    %500 = vmatpush1.msra.mxu0 0.0
    %501 = vmatprep.subr.mxu0 0.0
    %502 = vmatpush1.msra.mxu0 0.0
    %503 = vmatprep.subr.mxu0 0.0
    %504 = vmatpush1.msra.mxu0 0.0
    %505 = vmatprep.subr.mxu0 0.0
    %506 = vmatpush1.msra.mxu0 0.0
    %507 = vmatprep.subr.mxu0 0.0
    %508 = vmatpush1.msra.mxu0 0.0
    %509 = vmatprep.subr.mxu0 0.0
    %510 = vmatpush1.msra.mxu0 0.0
    %511 = vmatprep.subr.mxu0 0.0
    %512 = vmatpush1.msra.mxu0 0.0
    %513 = vmatprep.subr.mxu0 0.0
    %514 = vmatpush1.msra.mxu0 0.0
    %515 = vmatprep.subr.mxu0 0.0
    %516 = vmatpush1.msra.mxu0 0.0
    %517 = vmatprep.subr.mxu0 0.0
    %518 = vmatpush1.msra.mxu0 0.0
    %519 = vmatprep.subr.mxu0 0.0
    %520 = vmatpush1.msra.mxu0 0.0
    %521 = vmatprep.subr.mxu0 0.0
    %522 = vmatpush1.msra.mxu0 0.0
    %523 = vmatprep.subr.mxu0 0.0
    %524 = vmatpush1.msra.mxu0 0.0
    %525 = vmatprep.subr.mxu0 0.0
    %526 = vmatpush1.msra.mxu0 0.0
    %527 = vmatprep.subr.mxu0 0.0
    %528 = vmatpush1.msra.mxu0 0.0
    %529 = vmatprep.subr.mxu0 0.0
    %530 = vmatpush1.msra.mxu0 0.0
    %531 = vmatprep.subr.mxu0 0.0
    %532 = vmatpush1.msra.mxu0 0.0
    %533 = vmatprep.subr.mxu0 0.0
    %534 = vmatpush1.msra.mxu0 0.0
    %535 = vmatprep.subr.mxu0 0.0
    %536 = vmatpush1.msra.mxu0 0.0
    %537 = vmatprep.mubr.f32.mxu0 0.0
    %538 = vmatmul.mubr.f32.gmra.mrb[0].mxu0 %v471
    %v539 = vpop.f32.mrb[0].mxu0
    %v540 = vadd.f32 0.0, %v539
    %v541 = vpop.f32.mrb[0].mxu0
    %542 = vdwg.mxu0
    %v544 = vrot.slane %v540, 2
    %v546 = vadd.f32 %v217, %v544
    %v547 = vtanh.pop %v546
    %vm548 = vcmask 130054
    %549 = vst.msk [vmem:[#allocation2] sm:$0xc0] %vm548, %v547
    %vm550 = vcmask 261254
    %551 = vst.msk [vmem:[#allocation2 + $0x2] sm:$0xc0] %vm550, %v547
    %v553 = vrot.slane %v547, 6
    %v554 = vsel %vm40, %v553, 0
    %556 = vmatprep.subr.mxu0 0.0
    %557 = vmatpush1.msra.mxu0 %v19
    %558 = vmatprep.subr.mxu0 0.0
    %559 = vmatpush1.msra.mxu0 %v20
    %560 = vmatprep.subr.mxu0 0.0
    %561 = vmatpush1.msra.mxu0 %v21
    %562 = vmatprep.subr.mxu0 0.0
    %563 = vmatpush1.msra.mxu0 %v22
    %564 = vmatprep.subr.mxu0 0.0
    %565 = vmatpush1.msra.mxu0 0.0
    %566 = vmatprep.subr.mxu0 0.0
    %567 = vmatpush1.msra.mxu0 0.0
    %568 = vmatprep.subr.mxu0 0.0
    %569 = vmatpush1.msra.mxu0 0.0
    %570 = vmatprep.subr.mxu0 0.0
    %571 = vmatpush1.msra.mxu0 0.0
    %572 = vmatprep.subr.mxu0 0.0
    %573 = vmatpush1.msra.mxu0 0.0
    %574 = vmatprep.subr.mxu0 0.0
    %575 = vmatpush1.msra.mxu0 0.0
    %576 = vmatprep.subr.mxu0 0.0
    %577 = vmatpush1.msra.mxu0 0.0
    %578 = vmatprep.subr.mxu0 0.0
    %579 = vmatpush1.msra.mxu0 0.0
    %580 = vmatprep.subr.mxu0 0.0
    %581 = vmatpush1.msra.mxu0 0.0
    %582 = vmatprep.subr.mxu0 0.0
    %583 = vmatpush1.msra.mxu0 0.0
    %584 = vmatprep.subr.mxu0 0.0
    %585 = vmatpush1.msra.mxu0 0.0
    %586 = vmatprep.subr.mxu0 0.0
    %587 = vmatpush1.msra.mxu0 0.0
    %588 = vmatprep.subr.mxu0 0.0
    %589 = vmatpush1.msra.mxu0 0.0
    %590 = vmatprep.subr.mxu0 0.0
    %591 = vmatpush1.msra.mxu0 0.0
    %592 = vmatprep.subr.mxu0 0.0
    %593 = vmatpush1.msra.mxu0 0.0
    %594 = vmatprep.subr.mxu0 0.0
    %595 = vmatpush1.msra.mxu0 0.0
    %596 = vmatprep.subr.mxu0 0.0
    %597 = vmatpush1.msra.mxu0 0.0
    %598 = vmatprep.subr.mxu0 0.0
    %599 = vmatpush1.msra.mxu0 0.0
    %600 = vmatprep.subr.mxu0 0.0
    %601 = vmatpush1.msra.mxu0 0.0
    %602 = vmatprep.subr.mxu0 0.0
    %603 = vmatpush1.msra.mxu0 0.0
    %604 = vmatprep.subr.mxu0 0.0
    %605 = vmatpush1.msra.mxu0 0.0
    %606 = vmatprep.subr.mxu0 0.0
    %607 = vmatpush1.msra.mxu0 0.0
    %608 = vmatprep.subr.mxu0 0.0
    %609 = vmatpush1.msra.mxu0 0.0
    %610 = vmatprep.subr.mxu0 0.0
    %611 = vmatpush1.msra.mxu0 0.0
    %612 = vmatprep.subr.mxu0 0.0
    %613 = vmatpush1.msra.mxu0 0.0
    %614 = vmatprep.subr.mxu0 0.0
    %615 = vmatpush1.msra.mxu0 0.0
    %616 = vmatprep.subr.mxu0 0.0
    %617 = vmatpush1.msra.mxu0 0.0
    %618 = vmatprep.subr.mxu0 0.0
    %619 = vmatpush1.msra.mxu0 0.0
    %620 = vmatprep.mubr.f32.mxu0 0.0
    %621 = vmatmul.mubr.f32.gmra.mrb[0].mxu0 %v554
    %v622 = vpop.f32.mrb[0].mxu0
    %v623 = vadd.f32 0.0, %v622
    %v624 = vpop.f32.mrb[0].mxu0
    %625 = vdwg.mxu0
    %v626 = vadd.f32 %v221, %v623
    %v627 = vtanh.pop %v626
    %628 = vst.msk [vmem:[#allocation2 + $0x8] sm:$0x3] %vm300, %v627
    %629 = vst.msk [vmem:[#allocation2 + $0x6] sm:$0x3] %vm302, %v627
    %v631 = vsel %vm40, %v627, 0
    %633 = vmatprep.subr.mxu0 0.0
    %634 = vmatpush1.msra.mxu0 %v19
    %635 = vmatprep.subr.mxu0 0.0
    %636 = vmatpush1.msra.mxu0 %v20
    %637 = vmatprep.subr.mxu0 0.0
    %638 = vmatpush1.msra.mxu0 %v21
    %639 = vmatprep.subr.mxu0 0.0
    %640 = vmatpush1.msra.mxu0 %v22
    %641 = vmatprep.subr.mxu0 0.0
    %642 = vmatpush1.msra.mxu0 0.0
    %643 = vmatprep.subr.mxu0 0.0
    %644 = vmatpush1.msra.mxu0 0.0
    %645 = vmatprep.subr.mxu0 0.0
    %646 = vmatpush1.msra.mxu0 0.0
    %647 = vmatprep.subr.mxu0 0.0
    %648 = vmatpush1.msra.mxu0 0.0
    %649 = vmatprep.subr.mxu0 0.0
    %650 = vmatpush1.msra.mxu0 0.0
    %651 = vmatprep.subr.mxu0 0.0
    %652 = vmatpush1.msra.mxu0 0.0
    %653 = vmatprep.subr.mxu0 0.0
    %654 = vmatpush1.msra.mxu0 0.0
    %655 = vmatprep.subr.mxu0 0.0
    %656 = vmatpush1.msra.mxu0 0.0
    %657 = vmatprep.subr.mxu0 0.0
    %658 = vmatpush1.msra.mxu0 0.0
    %659 = vmatprep.subr.mxu0 0.0
    %660 = vmatpush1.msra.mxu0 0.0
    %661 = vmatprep.subr.mxu0 0.0
    %662 = vmatpush1.msra.mxu0 0.0
    %663 = vmatprep.subr.mxu0 0.0
    %664 = vmatpush1.msra.mxu0 0.0
    %665 = vmatprep.subr.mxu0 0.0
    %666 = vmatpush1.msra.mxu0 0.0
    %667 = vmatprep.subr.mxu0 0.0
    %668 = vmatpush1.msra.mxu0 0.0
    %669 = vmatprep.subr.mxu0 0.0
    %670 = vmatpush1.msra.mxu0 0.0
    %671 = vmatprep.subr.mxu0 0.0
    %672 = vmatpush1.msra.mxu0 0.0
    %673 = vmatprep.subr.mxu0 0.0
    %674 = vmatpush1.msra.mxu0 0.0
    %675 = vmatprep.subr.mxu0 0.0
    %676 = vmatpush1.msra.mxu0 0.0
    %677 = vmatprep.subr.mxu0 0.0
    %678 = vmatpush1.msra.mxu0 0.0
    %679 = vmatprep.subr.mxu0 0.0
    %680 = vmatpush1.msra.mxu0 0.0
    %681 = vmatprep.subr.mxu0 0.0
    %682 = vmatpush1.msra.mxu0 0.0
    %683 = vmatprep.subr.mxu0 0.0
    %684 = vmatpush1.msra.mxu0 0.0
    %685 = vmatprep.subr.mxu0 0.0
    %686 = vmatpush1.msra.mxu0 0.0
    %687 = vmatprep.subr.mxu0 0.0
    %688 = vmatpush1.msra.mxu0 0.0
    %689 = vmatprep.subr.mxu0 0.0
    %690 = vmatpush1.msra.mxu0 0.0
    %691 = vmatprep.subr.mxu0 0.0
    %692 = vmatpush1.msra.mxu0 0.0
    %693 = vmatprep.subr.mxu0 0.0
    %694 = vmatpush1.msra.mxu0 0.0
    %695 = vmatprep.subr.mxu0 0.0
    %696 = vmatpush1.msra.mxu0 0.0
    %697 = vmatprep.mubr.f32.mxu0 0.0
    %698 = vmatmul.mubr.f32.gmra.mrb[0].mxu0 %v631
    %v699 = vpop.f32.mrb[0].mxu0
    %v700 = vadd.f32 0.0, %v699
    %v701 = vpop.f32.mrb[0].mxu0
    %702 = vdwg.mxu0
    %v704 = vrot.slane %v700, 6
    %v706 = vadd.f32 %v224, %v704
    %v707 = vtanh.pop %v706
    %708 = vst.msk [vmem:[#allocation2 + $0x8] sm:$0xc] %vm382, %v707
    %709 = vst.msk [vmem:[#allocation2 + $0x2] sm:$0xc] %vm384, %v707
    %v711 = vrot.slane %v707, 2
    %v712 = vsel %vm40, %v711, 0
    %714 = vmatprep.subr.mxu0 0.0
    %715 = vmatpush1.msra.mxu0 %v19
    %716 = vmatprep.subr.mxu0 0.0
    %717 = vmatpush1.msra.mxu0 %v20
    %718 = vmatprep.subr.mxu0 0.0
    %719 = vmatpush1.msra.mxu0 %v21
    %720 = vmatprep.subr.mxu0 0.0
    %721 = vmatpush1.msra.mxu0 %v22
    %722 = vmatprep.subr.mxu0 0.0
    %723 = vmatpush1.msra.mxu0 0.0
    %724 = vmatprep.subr.mxu0 0.0
    %725 = vmatpush1.msra.mxu0 0.0
    %726 = vmatprep.subr.mxu0 0.0
    %727 = vmatpush1.msra.mxu0 0.0
    %728 = vmatprep.subr.mxu0 0.0
    %729 = vmatpush1.msra.mxu0 0.0
    %730 = vmatprep.subr.mxu0 0.0
    %731 = vmatpush1.msra.mxu0 0.0
    %732 = vmatprep.subr.mxu0 0.0
    %733 = vmatpush1.msra.mxu0 0.0
    %734 = vmatprep.subr.mxu0 0.0
    %735 = vmatpush1.msra.mxu0 0.0
    %736 = vmatprep.subr.mxu0 0.0
    %737 = vmatpush1.msra.mxu0 0.0
    %738 = vmatprep.subr.mxu0 0.0
    %739 = vmatpush1.msra.mxu0 0.0
    %740 = vmatprep.subr.mxu0 0.0
    %741 = vmatpush1.msra.mxu0 0.0
    %742 = vmatprep.subr.mxu0 0.0
    %743 = vmatpush1.msra.mxu0 0.0
    %744 = vmatprep.subr.mxu0 0.0
    %745 = vmatpush1.msra.mxu0 0.0
    %746 = vmatprep.subr.mxu0 0.0
    %747 = vmatpush1.msra.mxu0 0.0
    %748 = vmatprep.subr.mxu0 0.0
    %749 = vmatpush1.msra.mxu0 0.0
    %750 = vmatprep.subr.mxu0 0.0
    %751 = vmatpush1.msra.mxu0 0.0
    %752 = vmatprep.subr.mxu0 0.0
    %753 = vmatpush1.msra.mxu0 0.0
    %754 = vmatprep.subr.mxu0 0.0
    %755 = vmatpush1.msra.mxu0 0.0
    %756 = vmatprep.subr.mxu0 0.0
    %757 = vmatpush1.msra.mxu0 0.0
    %758 = vmatprep.subr.mxu0 0.0
    %759 = vmatpush1.msra.mxu0 0.0
    %760 = vmatprep.subr.mxu0 0.0
    %761 = vmatpush1.msra.mxu0 0.0
    %762 = vmatprep.subr.mxu0 0.0
    %763 = vmatpush1.msra.mxu0 0.0
    %764 = vmatprep.subr.mxu0 0.0
    %765 = vmatpush1.msra.mxu0 0.0
    %766 = vmatprep.subr.mxu0 0.0
    %767 = vmatpush1.msra.mxu0 0.0
    %768 = vmatprep.subr.mxu0 0.0
    %769 = vmatpush1.msra.mxu0 0.0
    %770 = vmatprep.subr.mxu0 0.0
    %771 = vmatpush1.msra.mxu0 0.0
    %772 = vmatprep.subr.mxu0 0.0
    %773 = vmatpush1.msra.mxu0 0.0
    %774 = vmatprep.subr.mxu0 0.0
    %775 = vmatpush1.msra.mxu0 0.0
    %776 = vmatprep.subr.mxu0 0.0
    %777 = vmatpush1.msra.mxu0 0.0
    %778 = vmatprep.mubr.f32.mxu0 0.0
    %779 = vmatmul.mubr.f32.gmra.mrb[0].mxu0 %v712
    %v780 = vpop.f32.mrb[0].mxu0
    %v781 = vadd.f32 0.0, %v780
    %v782 = vpop.f32.mrb[0].mxu0
    %783 = vdwg.mxu0
    %v785 = vrot.slane %v781, 4
    %v787 = vadd.f32 %v221, %v785
    %v788 = vtanh.pop %v787
    %789 = vst.msk [vmem:[#allocation2 + $0x8] sm:$0x30] %vm465, %v788
    %790 = vst.msk [vmem:[#allocation2 - $0x2] sm:$0x30] %vm467, %v788
    %v792 = vrot.slane %v788, 4
    %v793 = vsel %vm40, %v792, 0
    %795 = vmatprep.subr.mxu0 0.0
    %796 = vmatpush1.msra.mxu0 %v19
    %797 = vmatprep.subr.mxu0 0.0
    %798 = vmatpush1.msra.mxu0 %v20
    %799 = vmatprep.subr.mxu0 0.0
    %800 = vmatpush1.msra.mxu0 %v21
    %801 = vmatprep.subr.mxu0 0.0
    %802 = vmatpush1.msra.mxu0 %v22
    %803 = vmatprep.subr.mxu0 0.0
    %804 = vmatpush1.msra.mxu0 0.0
    %805 = vmatprep.subr.mxu0 0.0
    %806 = vmatpush1.msra.mxu0 0.0
    %807 = vmatprep.subr.mxu0 0.0
    %808 = vmatpush1.msra.mxu0 0.0
    %809 = vmatprep.subr.mxu0 0.0
    %810 = vmatpush1.msra.mxu0 0.0
    %811 = vmatprep.subr.mxu0 0.0
    %812 = vmatpush1.msra.mxu0 0.0
    %813 = vmatprep.subr.mxu0 0.0
    %814 = vmatpush1.msra.mxu0 0.0
    %815 = vmatprep.subr.mxu0 0.0
    %816 = vmatpush1.msra.mxu0 0.0
    %817 = vmatprep.subr.mxu0 0.0
    %818 = vmatpush1.msra.mxu0 0.0
    %819 = vmatprep.subr.mxu0 0.0
    %820 = vmatpush1.msra.mxu0 0.0
    %821 = vmatprep.subr.mxu0 0.0
    %822 = vmatpush1.msra.mxu0 0.0
    %823 = vmatprep.subr.mxu0 0.0
    %824 = vmatpush1.msra.mxu0 0.0
    %825 = vmatprep.subr.mxu0 0.0
    %826 = vmatpush1.msra.mxu0 0.0
    %827 = vmatprep.subr.mxu0 0.0
    %828 = vmatpush1.msra.mxu0 0.0
    %829 = vmatprep.subr.mxu0 0.0
    %830 = vmatpush1.msra.mxu0 0.0
    %831 = vmatprep.subr.mxu0 0.0
    %832 = vmatpush1.msra.mxu0 0.0
    %833 = vmatprep.subr.mxu0 0.0
    %834 = vmatpush1.msra.mxu0 0.0
    %835 = vmatprep.subr.mxu0 0.0
    %836 = vmatpush1.msra.mxu0 0.0
    %837 = vmatprep.subr.mxu0 0.0
    %838 = vmatpush1.msra.mxu0 0.0
    %839 = vmatprep.subr.mxu0 0.0
    %840 = vmatpush1.msra.mxu0 0.0
    %841 = vmatprep.subr.mxu0 0.0
    %842 = vmatpush1.msra.mxu0 0.0
    %843 = vmatprep.subr.mxu0 0.0
    %844 = vmatpush1.msra.mxu0 0.0
    %845 = vmatprep.subr.mxu0 0.0
    %846 = vmatpush1.msra.mxu0 0.0
    %847 = vmatprep.subr.mxu0 0.0
    %848 = vmatpush1.msra.mxu0 0.0
    %849 = vmatprep.subr.mxu0 0.0
    %850 = vmatpush1.msra.mxu0 0.0
    %851 = vmatprep.subr.mxu0 0.0
    %852 = vmatpush1.msra.mxu0 0.0
    %853 = vmatprep.subr.mxu0 0.0
    %854 = vmatpush1.msra.mxu0 0.0
    %855 = vmatprep.subr.mxu0 0.0
    %856 = vmatpush1.msra.mxu0 0.0
    %857 = vmatprep.subr.mxu0 0.0
    %858 = vmatpush1.msra.mxu0 0.0
    %859 = vmatprep.mubr.f32.mxu0 0.0
    %860 = vmatmul.mubr.f32.gmra.mrb[0].mxu0 %v793
    %v861 = vpop.f32.mrb[0].mxu0
    %v862 = vadd.f32 0.0, %v861
    %v863 = vpop.f32.mrb[0].mxu0
    %864 = vdwg.mxu0
    %v866 = vrot.slane %v862, 2
    %v868 = vadd.f32 %v224, %v866
    %v869 = vtanh.pop %v868
    %870 = vst.msk [vmem:[#allocation2 + $0x8] sm:$0xc0] %vm548, %v869
    %871 = vst.msk [vmem:[#allocation2 - $0x6] sm:$0xc0] %vm550, %v869
    %v872 = vld [vmem:[#allocation2] sm:$0xff]
    %v873 = vld [vmem:[#allocation2 + $0x8] sm:$0xff]
    %v874 = vld [vmem:[#allocation3] sm:$0xff]
    %v875 = vld [vmem:[#allocation3 + $0x8] sm:$0xff]
    %v877 = vsel %vm40, %v872, 0
    %v880 = vsel %vm40, %v873, 0
    %882 = vmatprep.subr.mxu0 0.0
    %883 = vmatpush1.msra.mxu0 %v27
    %884 = vmatprep.subr.mxu0 0.0
    %885 = vmatpush1.msra.mxu0 %v28
    %886 = vmatprep.subr.mxu0 0.0
    %887 = vmatpush1.msra.mxu0 %v29
    %888 = vmatprep.subr.mxu0 0.0
    %889 = vmatpush1.msra.mxu0 %v30
    %890 = vmatprep.subr.mxu0 0.0
    %891 = vmatpush1.msra.mxu0 0.0
    %892 = vmatprep.subr.mxu0 0.0
    %893 = vmatpush1.msra.mxu0 0.0
    %894 = vmatprep.subr.mxu0 0.0
    %895 = vmatpush1.msra.mxu0 0.0
    %896 = vmatprep.subr.mxu0 0.0
    %897 = vmatpush1.msra.mxu0 0.0
    %898 = vmatprep.subr.mxu0 0.0
    %899 = vmatpush1.msra.mxu0 0.0
    %900 = vmatprep.subr.mxu0 0.0
    %901 = vmatpush1.msra.mxu0 0.0
    %902 = vmatprep.subr.mxu0 0.0
    %903 = vmatpush1.msra.mxu0 0.0
    %904 = vmatprep.subr.mxu0 0.0
    %905 = vmatpush1.msra.mxu0 0.0
    %906 = vmatprep.subr.mxu0 0.0
    %907 = vmatpush1.msra.mxu0 0.0
    %908 = vmatprep.subr.mxu0 0.0
    %909 = vmatpush1.msra.mxu0 0.0
    %910 = vmatprep.subr.mxu0 0.0
    %911 = vmatpush1.msra.mxu0 0.0
    %912 = vmatprep.subr.mxu0 0.0
    %913 = vmatpush1.msra.mxu0 0.0
    %914 = vmatprep.subr.mxu0 0.0
    %915 = vmatpush1.msra.mxu0 0.0
    %916 = vmatprep.subr.mxu0 0.0
    %917 = vmatpush1.msra.mxu0 0.0
    %918 = vmatprep.subr.mxu0 0.0
    %919 = vmatpush1.msra.mxu0 0.0
    %920 = vmatprep.subr.mxu0 0.0
    %921 = vmatpush1.msra.mxu0 0.0
    %922 = vmatprep.subr.mxu0 0.0
    %923 = vmatpush1.msra.mxu0 0.0
    %924 = vmatprep.subr.mxu0 0.0
    %925 = vmatpush1.msra.mxu0 0.0
    %926 = vmatprep.subr.mxu0 0.0
    %927 = vmatpush1.msra.mxu0 0.0
    %928 = vmatprep.subr.mxu0 0.0
    %929 = vmatpush1.msra.mxu0 0.0
    %930 = vmatprep.subr.mxu0 0.0
    %931 = vmatpush1.msra.mxu0 0.0
    %932 = vmatprep.subr.mxu0 0.0
    %933 = vmatpush1.msra.mxu0 0.0
    %934 = vmatprep.subr.mxu0 0.0
    %935 = vmatpush1.msra.mxu0 0.0
    %936 = vmatprep.subr.mxu0 0.0
    %937 = vmatpush1.msra.mxu0 0.0
    %938 = vmatprep.subr.mxu0 0.0
    %939 = vmatpush1.msra.mxu0 0.0
    %940 = vmatprep.subr.mxu0 0.0
    %941 = vmatpush1.msra.mxu0 0.0
    %942 = vmatprep.subr.mxu0 0.0
    %943 = vmatpush1.msra.mxu0 0.0
    %944 = vmatprep.subr.mxu0 0.0
    %945 = vmatpush1.msra.mxu0 0.0
    %946 = vmatprep.mubr.f32.mxu0 0.0
    %947 = vmatmul.mubr.f32.gmra.mrb[0].mxu0 %v877
    %v948 = vpop.f32.mrb[0].mxu0
    %v949 = vadd.f32 %v874, %v948
    %v950 = vpop.f32.mrb[0].mxu0
    %951 = vmatprep.mubr.f32.mxu0 0.0
    %952 = vmatmul.mubr.f32.gmra.mrb[0].mxu0 %v880
    %v953 = vpop.f32.mrb[0].mxu0
    %v954 = vadd.f32 %v875, %v953
    %v955 = vpop.f32.mrb[0].mxu0
    %956 = vdwg.mxu0
    %v957 = vtanh.pop %v949
    %v958 = vtanh.pop %v954
    %v959 = vlaneseq
    %v960 = vshrl.u32 %v959, 7
    %v961 = vsub.s32 0, %v960
    %v962 = vrot.slane %v33, %v961
    %v963 = vmul.f32 %v957, %v962
    %v964 = vmul.f32 %v958, %v962
    %v965 = vsel %vm40, %v963, 0.0
    %966 = vadd.xlane.f32.xlu0 %v965
    %v967 = vpop.xlane.xlu0 %966
    %v968 = vsel %vm40, %v964, 0.0
    %969 = vadd.xlane.f32.xlu0 %v968
    %v970 = vpop.xlane.xlu0 %969
    %v971 = vlaneseq
    %v972 = vshrl.u32 %v971, 7
    %v973 = vsub.s32 0, %v972
    %v974 = vrot.slane %v34, %v973
    %v975 = vadd.f32 %v967, %v974
    %v976 = vadd.f32 %v970, %v974
    %v977 = vtanh.pop %v975
    %v978 = vtanh.pop %v976
    %v980 = vrot.slane %v977, 2
    %v982 = vmax.f32 %v977, %v980
    %v983 = vrot.slane %v977, 4
    %v985 = vmax.f32 %v982, %v983
    %v986 = vrot.slane %v977, 6
    %v988 = vmax.f32 %v985, %v986
    %v989 = vmax.f32 %v988, %v978
    %v991 = vrot.slane %v978, 2
    %v993 = vmax.f32 %v989, %v991
    %v994 = vrot.slane %v978, 4
    %v996 = vmax.f32 %v993, %v994
    %v997 = vrot.slane %v978, 6
    %v999 = vmax.f32 %v996, %v997
    %v1000 = vsub.f32 %v977, %v999
    %v1001 = vmul.f32 %v1000, 1.442695
    %v1002 = vpow.pop %v1001
    %v1004 = vrot.slane %v999, 6
    %v1006 = vsub.f32 %v977, %v1004
    %v1007 = vmul.f32 %v1006, 1.442695
    %v1008 = vpow.pop %v1007
    %v1009 = vrot.slane %v999, 4
    %v1011 = vsub.f32 %v977, %v1009
    %v1012 = vmul.f32 %v1011, 1.442695
    %v1013 = vpow.pop %v1012
    %v1014 = vrot.slane %v999, 2
    %v1016 = vsub.f32 %v977, %v1014
    %v1017 = vmul.f32 %v1016, 1.442695
    %v1018 = vpow.pop %v1017
    %v1019 = vsub.f32 %v978, %v999
    %v1020 = vmul.f32 %v1019, 1.442695
    %v1021 = vpow.pop %v1020
    %v1022 = vsub.f32 %v978, %v1004
    %v1023 = vmul.f32 %v1022, 1.442695
    %v1024 = vpow.pop %v1023
    %v1025 = vsub.f32 %v978, %v1009
    %v1026 = vmul.f32 %v1025, 1.442695
    %v1027 = vpow.pop %v1026
    %v1028 = vsub.f32 %v978, %v1014
    %v1029 = vmul.f32 %v1028, 1.442695
    %v1030 = vpow.pop %v1029
    %v1032 = vrot.slane %v1008, 2
    %v1034 = vadd.f32 %v1002, %v1032
    %v1036 = vrot.slane %v1013, 4
    %v1038 = vadd.f32 %v1034, %v1036
    %v1040 = vrot.slane %v1018, 6
    %v1042 = vadd.f32 %v1038, %v1040
    %v1043 = vadd.f32 %v1042, %v1021
    %v1045 = vrot.slane %v1024, 2
    %v1047 = vadd.f32 %v1043, %v1045
    %v1049 = vrot.slane %v1027, 4
    %v1051 = vadd.f32 %v1047, %v1049
    %v1053 = vrot.slane %v1030, 6
    %v1055 = vadd.f32 %v1051, %v1053
    %v1056 = vrcp.pop %v1055
    %v1057 = vmul.f32 1.0, %v1056
    %v1058 = vmul.f32 %v1002, %v1057
    %1060 = vset.pattern.permute.xlu0 0
    %1061 = vperm.xlu0 %1060, %v1058
    %v1062 = vpop.permute.xlu0 %1061
    %v1064 = vmul.f32 %v1062, %v872
    %v1066 = vrot.slane %v1057, 6
    %v1068 = vmul.f32 %v1008, %v1066
    %1070 = vset.pattern.permute.xlu0 0
    %1071 = vperm.xlu0 %1070, %v1068
    %v1072 = vpop.permute.xlu0 %1071
    %v1074 = vmul.f32 %v1072, %v872
    %v1076 = vrot.slane %v1074, 2
    %v1078 = vadd.f32 %v1064, %v1076
    %v1079 = vrot.slane %v1057, 4
    %v1081 = vmul.f32 %v1013, %v1079
    %1083 = vset.pattern.permute.xlu0 0
    %1084 = vperm.xlu0 %1083, %v1081
    %v1085 = vpop.permute.xlu0 %1084
    %v1087 = vmul.f32 %v1085, %v872
    %v1089 = vrot.slane %v1087, 4
    %v1091 = vadd.f32 %v1078, %v1089
    %v1092 = vrot.slane %v1057, 2
    %v1094 = vmul.f32 %v1018, %v1092
    %1096 = vset.pattern.permute.xlu0 0
    %1097 = vperm.xlu0 %1096, %v1094
    %v1098 = vpop.permute.xlu0 %1097
    %v1100 = vmul.f32 %v1098, %v872
    %v1102 = vrot.slane %v1100, 6
    %v1104 = vadd.f32 %v1091, %v1102
    %v1105 = vmul.f32 %v1021, %v1057
    %1107 = vset.pattern.permute.xlu0 0
    %1108 = vperm.xlu0 %1107, %v1105
    %v1109 = vpop.permute.xlu0 %1108
    %v1111 = vmul.f32 %v1109, %v873
    %v1112 = vadd.f32 %v1104, %v1111
    %v1113 = vmul.f32 %v1024, %v1066
    %1115 = vset.pattern.permute.xlu0 0
    %1116 = vperm.xlu0 %1115, %v1113
    %v1117 = vpop.permute.xlu0 %1116
    %v1119 = vmul.f32 %v1117, %v873
    %v1121 = vrot.slane %v1119, 2
    %v1123 = vadd.f32 %v1112, %v1121
    %v1124 = vmul.f32 %v1027, %v1079
    %1126 = vset.pattern.permute.xlu0 0
    %1127 = vperm.xlu0 %1126, %v1124
    %v1128 = vpop.permute.xlu0 %1127
    %v1130 = vmul.f32 %v1128, %v873
    %v1132 = vrot.slane %v1130, 4
    %v1134 = vadd.f32 %v1123, %v1132
    %v1135 = vmul.f32 %v1030, %v1092
    %1137 = vset.pattern.permute.xlu0 0
    %1138 = vperm.xlu0 %1137, %v1135
    %v1139 = vpop.permute.xlu0 %1138
    %v1141 = vmul.f32 %v1139, %v873
    %v1143 = vrot.slane %v1141, 6
    %v1145 = vadd.f32 %v1134, %v1143
    %1146 = vst.msk [vmem:[#allocation4] sm:$0x3] %vm114, %v1145
    // Predicated region
    $region14: #{temporal_attention.1} parent=1 // pred_check
      _
    $region15: #{temporal_attention.1} parent=1 // pred_check_branch
      %1148 = sbr.rel (0) target = $region17
    $region16: #{temporal_attention.1} parent=1 // pred_region
      %s1150 = ssub.s32 32, 32
      %1151 = vsyncadd [#allocation5], %s1150
      %s1153 = sshll.u32 [#allocation4], 4
      %s1154 = int_to_ptr.vmem [resolvable:$true] %s1153
      %1156 = dma.vmem_to_hbm [thread:$0]  %s1154, 32, %s3, [#allocation5]
    $region17: #{temporal_attention.1} parent=1 // pred_fallthru
      _
    // Predicated region
    $region18: #{temporal_attention.1} parent=1 // pred_check
      _
    $region19: #{temporal_attention.1} parent=1 // pred_check_branch
      %1158 = sbr.rel (0) target = $region21
    $region20: #{temporal_attention.1} parent=1 // pred_region
      %1159 = dma.done [#allocation5], 32
    $region21: #{temporal_attention.1} parent=1 // pred_fallthru
      _
    %1160 = vsyncpa [#allocation5], 1

</llo_original>
